<compile_context>
chip_gen: v7x
topology: tpu7x:2x2x1
jax: 0.10.0
libtpu: 0.0.40
codegen_flags: <defaults>
</compile_context>

<pallas_src>
import functools

import jax
import jax.numpy as jnp
from jax.experimental import pallas as pl
from jax.experimental.pallas import tpu as pltpu


# ----------------------------------------------------------------------------
# Per-generation budgets
# ----------------------------------------------------------------------------
def _detect_vmem_limit():
    try:
        kind = jax.devices()[0].device_kind.lower()
    except Exception:
        kind = ""
    if "v7" in kind or "7x" in kind:
        return 56 * 1024 * 1024           # v7x: 64 MiB physical, leave headroom
    if "v5 lite" in kind or "v5e" in kind or "v5p" in kind or "v6" in kind:
        return 100 * 1024 * 1024          # v5e/v6e: 128 MiB physical
    return 64 * 1024 * 1024               # unknown / conservative


_VMEM_LIMIT = _detect_vmem_limit()
_E_TILE_TARGET = 12 * 1024 * 1024 if _VMEM_LIMIT >= 100 * 1024 * 1024 else 6 * 1024 * 1024


def _round_up(x, m):
    return ((x + m - 1) // m) * m


def _choose_row_tile(N, H, bytes_per_elem=2):
    """Rows (source nodes) per fused-layer block.

    Budget accounts for double-buffered input + output e blocks (~4x block bytes).
    """
    row_bytes = N * H * bytes_per_elem * 4
    max_rows = max(8, _E_TILE_TARGET // row_bytes)
    if N <= max_rows:
        return N
    t = (max_rows // 8) * 8
    while t >= 8:
        if N % t == 0:
            return t
        t -= 8
    # No multiple-of-8 divisor under budget: smallest multiple-of-8 divisor.
    t = 8
    while t <= N:
        if N % t == 0:
            return t
        t += 8
    # TODO(synk): pathological N (no multiple-of-8 divisor at all) falls back to
    #             full rows; pad N upstream if this overflows VMEM for huge N.
    return N


# ----------------------------------------------------------------------------
# Generic fused linear:  y = act(x @ W + b), bf16 MXU, f32 accumulate
# ----------------------------------------------------------------------------
def _linear_kernel(x_ref, w_ref, b_ref, o_ref, *, activation):
    x = x_ref[...].astype(jnp.bfloat16)
    acc = jnp.dot(x, w_ref[...], preferred_element_type=jnp.float32)
    acc = acc + b_ref[...]
    if activation == "relu":
        acc = jnp.maximum(acc, 0.0)
    o_ref[...] = acc.astype(o_ref.dtype)


def _linear_call(x, w, b, activation, out_dtype):
    M, K = x.shape
    N_out = w.shape[1]
    tile_m = min(2048, _round_up(M, 8))
    M_pad = _round_up(M, tile_m)
    if M_pad != M:
        x = jnp.pad(x, ((0, M_pad - M), (0, 0)))
    out = pl.pallas_call(
        functools.partial(_linear_kernel, activation=activation),
        out_shape=jax.ShapeDtypeStruct((M_pad, N_out), out_dtype),
        grid_spec=pltpu.PrefetchScalarGridSpec(
            num_scalar_prefetch=0,
            grid=(M_pad // tile_m,),
            in_specs=[
                pl.BlockSpec((tile_m, K), lambda i: (i, 0)),
                pl.BlockSpec((K, N_out), lambda i: (0, 0)),
                pl.BlockSpec((1, N_out), lambda i: (0, 0)),
            ],
            out_specs=pl.BlockSpec((tile_m, N_out), lambda i: (i, 0)),
        ),
        compiler_params=pltpu.CompilerParams(
            dimension_semantics=("parallel",), vmem_limit_bytes=_VMEM_LIMIT
        ),
    )(x, w.astype(jnp.bfloat16), b.reshape(1, N_out).astype(jnp.float32))
    return out if M_pad == M else out[:M]


def linear_pallas(x, w, b, activation="none", out_dtype=jnp.float32):
    """y = act(x @ w + b). x:(M,K), w:(K,N), b:(N,).

    Narrow outputs (N < 128, divides 128) are lane-packed: `pack` consecutive
    rows of x are processed per MXU row with a block-diagonal weight so the
    output stores are 128-lane dense.
    """
    M, K = x.shape
    N_out = w.shape[1]
    pack = 1
    if N_out < 128 and 128 % N_out == 0:
        pack = min(128 // N_out, 8)
    if pack > 1:
        M_p = _round_up(M, pack)
        if M_p != M:
            x = jnp.pad(x, ((0, M_p - M), (0, 0)))
        xp = x.reshape(M_p // pack, pack * K)          # free (row-major view)
        wp = jnp.zeros((pack * K, pack * N_out), jnp.float32)
        for i in range(pack):
            wp = wp.at[i * K:(i + 1) * K, i * N_out:(i + 1) * N_out].set(w)
        bp = jnp.tile(b, pack)
        y = _linear_call(xp, wp, bp, activation, out_dtype)
        y = y.reshape(M_p, N_out)
        return y[:M] if M_p != M else y
    return _linear_call(x, w, b, activation, out_dtype)


# ----------------------------------------------------------------------------
# Fused GatedGCN layer:  one kernel per (batch, i-tile) producing BOTH
#   x <- x + relu(Ux + sum_j sigmoid(e_ij) * Vx_j / (sum_j sigmoid(e_ij) + eps))
#   e <- e + relu(e @ A + bA + B1 x_i + B2 x_j)
# e read once (bf16), e written once (bf16); xw slab passed once.
# ----------------------------------------------------------------------------
def _fused_layer_kernel(e_ref, xw_ref, x_ref, a_ref, ba_ref, xo_ref, eo_ref):
    tile_i = x_ref.shape[1]
    N = e_ref.shape[2]
    H = x_ref.shape[-1]

    row0 = pl.multiple_of(pl.program_id(1) * tile_i, tile_i)

    e_bf = e_ref[0]                                   # (ti, N, H) bf16
    e = e_bf.astype(jnp.float32)
    gate = jax.nn.sigmoid(e)                          # (ti, N, H)

    xw_all = xw_ref[0]                                # (N, 4H) f32
    xw_i = xw_ref[0, pl.ds(row0, tile_i), :]          # (ti, 4H) f32

    Ux = xw_i[:, 0:H]                                 # (ti, H)
    B1x = xw_i[:, 2 * H:3 * H]                        # (ti, H)  source i
    Vx = xw_all[:, H:2 * H]                           # (N, H)
    B2x = xw_all[:, 3 * H:4 * H]                      # (N, H)   target j

    # --- node update (gated neighbour aggregation + residual ReLU)
    num = jnp.sum(gate * Vx[None, :, :], axis=1)      # (ti, H)
    den = jnp.sum(gate, axis=1) + 1e-20               # (ti, H)
    agg = num / den                                   # exact division
    xo_ref[0] = x_ref[0] + jnp.maximum(Ux + agg, 0.0)

    # --- edge update (A-matmul fused, bf16 MXU, f32 accumulate)
    e2 = e_bf.reshape(tile_i * N, H)                  # bf16, no extra cast copy
    eA = jnp.dot(e2, a_ref[...], preferred_element_type=jnp.float32) + ba_ref[...]
    upd = eA.reshape(tile_i, N, H) + B1x[:, None, :] + B2x[None, :, :]
    eo_ref[0] = (e + jnp.maximum(upd, 0.0)).astype(eo_ref.dtype)


def fused_layer_pallas(e, xw, x, A, bA, tile_i):
    B, N, _, H = e.shape
    x_new, e_new = pl.pallas_call(
        _fused_layer_kernel,
        out_shape=(
            jax.ShapeDtypeStruct((B, N, H), jnp.float32),
            jax.ShapeDtypeStruct((B, N, N, H), e.dtype),
        ),
        grid_spec=pltpu.PrefetchScalarGridSpec(
            num_scalar_prefetch=0,
            grid=(B, N // tile_i),
            in_specs=[
                pl.BlockSpec((1, tile_i, N, H), lambda b, i: (b, i, 0, 0)),
                pl.BlockSpec((1, N, 4 * H), lambda b, i: (b, 0, 0)),
                pl.BlockSpec((1, tile_i, H), lambda b, i: (b, i, 0)),
                pl.BlockSpec((H, H), lambda b, i: (0, 0)),
                pl.BlockSpec((1, H), lambda b, i: (0, 0)),
            ],
            out_specs=[
                pl.BlockSpec((1, tile_i, H), lambda b, i: (b, i, 0)),
                pl.BlockSpec((1, tile_i, N, H), lambda b, i: (b, i, 0, 0)),
            ],
        ),
        input_output_aliases={0: 1},                  # e updated in place
        compiler_params=pltpu.CompilerParams(
            dimension_semantics=("parallel", "parallel"),
            vmem_limit_bytes=_VMEM_LIMIT,
        ),
    )(e, xw, x, A.astype(jnp.bfloat16), bA.reshape(1, H).astype(jnp.float32))
    return x_new, e_new


# ----------------------------------------------------------------------------
# Decoder: MLP (W1 + ReLU + W2) fused with masked log-softmax, one batch row
# per grid step, lane-dense (1, E) output.
# ----------------------------------------------------------------------------
def _decoder_fused_kernel(x_ref, mask_ref, w1_ref, b1_ref, w2_ref, b2_ref, o_ref):
    x = x_ref[0].astype(jnp.bfloat16)                 # (E, H)
    h = jnp.dot(x, w1_ref[...], preferred_element_type=jnp.float32) + b1_ref[...]
    h = jnp.maximum(h, 0.0)
    # (1,H) @ (E,H)^T -> (1,E): lane axis is the edge axis (dense stores/reduces)
    logits = jax.lax.dot_general(
        w2_ref[...], h.astype(jnp.bfloat16),
        (((1,), (1,)), ((), ())),
        preferred_element_type=jnp.float32,
    ) + b2_ref[...]                                   # (1, E)
    m = mask_ref[0]                                   # (1, E)
    # TODO(synk): mask polarity assumed (mask==1 -> edge is invalid / excluded).
    logits = jnp.where(m > 0.5, jnp.float32(-1e30), logits)
    x_max = jnp.max(logits, axis=-1, keepdims=True)
    ex = jnp.exp(logits - x_max)
    lse = jnp.log(jnp.sum(ex, axis=-1, keepdims=True)) + x_max
    o_ref[0] = logits - lse


def mlp_decoder(edge_embedding, mask, p):
    B, E, H = edge_embedding.shape
    mask3 = mask.reshape(B, 1, E).astype(jnp.float32)
    out = pl.pallas_call(
        _decoder_fused_kernel,
        out_shape=jax.ShapeDtypeStruct((B, 1, E), jnp.float32),
        grid_spec=pltpu.PrefetchScalarGridSpec(
            num_scalar_prefetch=0,
            grid=(B,),
            in_specs=[
                pl.BlockSpec((1, E, H), lambda b: (b, 0, 0)),
                pl.BlockSpec((1, 1, E), lambda b: (b, 0, 0)),
                pl.BlockSpec((H, H), lambda b: (0, 0)),
                pl.BlockSpec((1, H), lambda b: (0, 0)),
                pl.BlockSpec((1, H), lambda b: (0, 0)),
                pl.BlockSpec((1, 1), lambda b: (0, 0)),
            ],
            out_specs=pl.BlockSpec((1, 1, E), lambda b: (b, 0, 0)),
        ),
        compiler_params=pltpu.CompilerParams(
            dimension_semantics=("parallel",), vmem_limit_bytes=_VMEM_LIMIT
        ),
    )(
        edge_embedding,
        mask3,
        p["W1"].astype(jnp.bfloat16),
        p["b1"].reshape(1, H).astype(jnp.float32),
        p["W2"].reshape(1, H).astype(jnp.bfloat16),
        p["b2"].reshape(1, 1).astype(jnp.float32),
    )
    return out.reshape(B, E)


# ----------------------------------------------------------------------------
# Problem-specific edge feature construction (glue, matches the PyTorch code)
# ----------------------------------------------------------------------------
def build_edge_features(edges, problem, solutions=None):
    B, n, _ = edges.shape
    if problem == "prp":
        upper = jnp.triu(edges, 1)
        upper_t = jnp.triu(jnp.transpose(edges, (0, 2, 1)), 1)
        return jnp.stack([upper, upper_t], axis=-1)                  # (B, n, n, 2)
    elif problem == "tsp":
        di = jnp.zeros((n, n), dtype=bool)
        idx = jnp.arange(n - 1)
        di = di.at[idx, idx + 1].set(True)
        di = di.at[idx + 1, idx].set(True)
        di = di.at[-1, 0].set(True)
        di = di.at[0, -1].set(True)
        di_b = jnp.broadcast_to(di, (B, n, n))
        return jnp.stack(
            [di_b.astype(edges.dtype), (~di_b).astype(edges.dtype), edges], axis=-1
        )                                                            # (B, n, n, 3)
    elif problem == "gpp":
        assert solutions is not None

        def per_batch(e, sol):
            idx_mat = jnp.zeros((n, n), dtype=bool)
            idx_mat = idx_mat.at[sol[0][:, None], sol[1][None, :]].set(True)
            idx_mat = idx_mat.at[sol[1][:, None], sol[0][None, :]].set(True)
            return jnp.stack([e * idx_mat, e * (~idx_mat)], axis=-1)

        return jax.vmap(per_batch)(edges, solutions)                 # (B, n, n, 2)
    else:
        raise ValueError(problem)


# ----------------------------------------------------------------------------
# Encoder / model forward
# ----------------------------------------------------------------------------
def gnn_encoder(nodes, edges_feat, p):
    B, N, node_dim = nodes.shape
    edge_dim = edges_feat.shape[-1]
    H = p["W_node"].shape[1]          # derived from weights (static under jit)

    x = linear_pallas(nodes.reshape(B * N, node_dim), p["W_node"], p["b_node"])
    x = x.reshape(B, N, H)
    # edge tensor lives in bf16 in HBM across layers (dominant traffic)
    e = linear_pallas(
        edges_feat.reshape(B * N * N, edge_dim), p["W_edge"], p["b_edge"],
        out_dtype=jnp.bfloat16,
    ).reshape(B, N, N, H)

    tile_i = _choose_row_tile(N, H)

    for layer in p["layers"]:
        # One lane-dense (H, 4H) matmul replaces the four U/V/B1/B2 linears.
        xw = linear_pallas(x.reshape(B * N, H), layer["Wcat"], layer["bcat"])
        xw = xw.reshape(B, N, 4 * H)
        # Fused node + edge update (single read/write of e per layer).
        # TODO(synk): B1/B2 use the pre-update x (canonical GatedGCN convention);
        #             the reference encoder source is not provided.
        x, e = fused_layer_pallas(e, xw, x, layer["A"], layer["bA"], tile_i)

    return x, e


@functools.partial(jax.jit, static_argnames=("problem",))
def model_forward(params, batch, mask, problem, solutions=None):
    nodes, edges = batch
    edge_feats = build_edge_features(edges, problem, solutions)
    node_embedding, edge_embedding = gnn_encoder(nodes, edge_feats, params["encoder"])
    edge_embedding = edge_embedding.reshape(
        edge_embedding.shape[0], -1, edge_embedding.shape[-1]
    )
    log_p = mlp_decoder(edge_embedding, mask, params["decoder"])
    return log_p


# ----------------------------------------------------------------------------
# Deterministic parameter init
# ----------------------------------------------------------------------------
def _lin_init(key, fan_in, fan_out):
    kw, kb = jax.random.split(key)
    scale = 1.0 / jnp.sqrt(jnp.float32(fan_in))
    w = jax.random.uniform(kw, (fan_in, fan_out), jnp.float32, -scale, scale)
    b = jax.random.uniform(kb, (fan_out,), jnp.float32, -scale, scale)
    return w, b


def init_params(key, node_dim, edge_dim, hidden, n_layers):
    keys = jax.random.split(key, 4 + 5 * n_layers)
    ki = iter(keys)
    enc = {}
    enc["W_node"], enc["b_node"] = _lin_init(next(ki), node_dim, hidden)
    enc["W_edge"], enc["b_edge"] = _lin_init(next(ki), edge_dim, hidden)
    layers = []
    for _ in range(n_layers):
        U, bU = _lin_init(next(ki), hidden, hidden)
        V, bV = _lin_init(next(ki), hidden, hidden)
        B1, bB1 = _lin_init(next(ki), hidden, hidden)
        B2, bB2 = _lin_init(next(ki), hidden, hidden)
        A, bA = _lin_init(next(ki), hidden, hidden)
        layers.append({
            "Wcat": jnp.concatenate([U, V, B1, B2], axis=1),      # (H, 4H)
            "bcat": jnp.concatenate([bU, bV, bB1, bB2], axis=0),  # (4H,)
            "A": A,
            "bA": bA,
        })
    enc["layers"] = layers
    dec = {}
    dec["W1"], dec["b1"] = _lin_init(next(ki), hidden, hidden)
    dec["W2"], dec["b2"] = _lin_init(next(ki), hidden, 1)
    return {"encoder": enc, "decoder": dec}


# ----------------------------------------------------------------------------
if __name__ == "__main__":
    key = jax.random.PRNGKey(0)
    B, n, node_dim, hidden, n_layers = 2, 8, 2, 32, 2

    k_nodes, k_params = jax.random.split(key)
    nodes = jax.random.uniform(k_nodes, (B, n, node_dim), dtype=jnp.float32)
    # pairwise Euclidean distance matrix as raw edge weights (TSP convention)
    edges = jnp.sqrt(
        jnp.sum((nodes[:, :, None, :] - nodes[:, None, :, :]) ** 2, axis=-1) + 1e-12
    )
    # mask out self-loop edges (mask==1 -> invalid)
    mask = jnp.broadcast_to(
        jnp.eye(n, dtype=jnp.float32).reshape(1, n * n), (B, n * n)
    )

    params = init_params(k_params, node_dim=node_dim, edge_dim=3, hidden=hidden,
                         n_layers=n_layers)

    log_p = model_forward(params, (nodes, edges), mask, problem="tsp")
    log_p = jax.block_until_ready(log_p)

    assert log_p.shape == (B, n * n)
    assert bool(jnp.all(jnp.isfinite(log_p)))
    # each row is a valid log-probability distribution over edges
    assert bool(jnp.allclose(jnp.sum(jnp.exp(log_p), axis=-1), 1.0, atol=1e-3))
    print("KERNEL_OK")
</pallas_src>

<mosaic_0001>
module attributes {stable_mosaic.version = 11 : i64} {
  func.func @_linear_kernel(%arg0: i32, %arg1: memref<32x12xf32, #tpu.memory_space<vmem>>, %arg2: memref<12x128xbf16, #tpu.memory_space<vmem>>, %arg3: memref<1x128xf32, #tpu.memory_space<vmem>>, %arg4: memref<32x128xbf16, #tpu.memory_space<vmem>>) attributes {dimension_semantics = [#tpu.dimension_semantics<parallel>], iteration_bounds = array<i64: 1>, scalar_prefetch = 0 : i64, scratch_operands = 0 : i64, tpu.core_type = #tpu.core_type<tc>, window_params = [{transform_indices = @transform_0, window_bounds = array<i64: 32, 12>}, {pipeline_mode = #tpu.pipeline_mode<synchronous>, transform_indices = @transform_1, window_bounds = array<i64: 12, 128>}, {pipeline_mode = #tpu.pipeline_mode<synchronous>, transform_indices = @transform_2, window_bounds = array<i64: 1, 128>}, {transform_indices = @transform_3, window_bounds = array<i64: 32, 128>}]} {
    %c0 = arith.constant 0 : index
    %c0_0 = arith.constant 0 : index
    %0 = vector.load %arg1[%c0, %c0_0] : memref<32x12xf32, #tpu.memory_space<vmem>>, vector<32x12xf32>
    %1 = arith.truncf %0 : vector<32x12xf32> to vector<32x12xbf16>
    %c0_1 = arith.constant 0 : index
    %c0_2 = arith.constant 0 : index
    %2 = vector.load %arg2[%c0_1, %c0_2] : memref<12x128xbf16, #tpu.memory_space<vmem>>, vector<12x128xbf16>
    %cst = arith.constant dense<0.000000e+00> : vector<32x128xf32>
    %3 = tpu.matmul %1, %2, %cst {dimension_numbers = #tpu.dot_dimension_numbers<[1], [0], [0], [1], [0, 0, 1, 1], [], []>} : vector<32x12xbf16>, vector<12x128xbf16>, vector<32x128xf32> -> vector<32x128xf32>
    %c0_3 = arith.constant 0 : index
    %c0_4 = arith.constant 0 : index
    %4 = vector.load %arg3[%c0_3, %c0_4] : memref<1x128xf32, #tpu.memory_space<vmem>>, vector<1x128xf32>
    %5 = vector.broadcast %4 : vector<1x128xf32> to vector<32x128xf32>
    %6 = arith.addf %3, %5 : vector<32x128xf32>
    %7 = arith.truncf %6 : vector<32x128xf32> to vector<32x128xbf16>
    %c0_5 = arith.constant 0 : index
    %c0_6 = arith.constant 0 : index
    %8 = vector.load %arg4[%c0_5, %c0_6] : memref<32x128xbf16, #tpu.memory_space<vmem>>, vector<32x128xbf16>
    tpu.vector_store %arg4[%c0_5, %c0_6], %7 {strides = array<i32>} : memref<32x128xbf16, #tpu.memory_space<vmem>>, vector<32x128xbf16>,
    return
  }
  func.func @transform_0(%arg0: i32) -> (i32, i32) {
    %c0_i32 = arith.constant 0 : i32
    %c0_i32_0 = arith.constant 0 : i32
    return %arg0, %c0_i32 : i32, i32
  }
  func.func @transform_1(%arg0: i32) -> (i32, i32) {
    %c0_i32 = arith.constant 0 : i32
    %c0_i32_0 = arith.constant 0 : i32
    %c0_i32_1 = arith.constant 0 : i32
    return %c0_i32, %c0_i32_0 : i32, i32
  }
  func.func @transform_2(%arg0: i32) -> (i32, i32) {
    %c0_i32 = arith.constant 0 : i32
    %c0_i32_0 = arith.constant 0 : i32
    %c0_i32_1 = arith.constant 0 : i32
    return %c0_i32, %c0_i32_0 : i32, i32
  }
  func.func @transform_3(%arg0: i32) -> (i32, i32) {
    %c0_i32 = arith.constant 0 : i32
    %c0_i32_0 = arith.constant 0 : i32
    return %arg0, %c0_i32 : i32, i32
  }
}

module attributes {stable_mosaic.version = 11 : i64} {
  func.func @_linear_kernel(%arg0: i32, %arg1: memref<8x8xf32, #tpu.memory_space<vmem>>, %arg2: memref<8x128xbf16, #tpu.memory_space<vmem>>, %arg3: memref<1x128xf32, #tpu.memory_space<vmem>>, %arg4: memref<8x128xf32, #tpu.memory_space<vmem>>) attributes {dimension_semantics = [#tpu.dimension_semantics<parallel>], iteration_bounds = array<i64: 1>, scalar_prefetch = 0 : i64, scratch_operands = 0 : i64, tpu.core_type = #tpu.core_type<tc>, window_params = [{transform_indices = @transform_0, window_bounds = array<i64: 8, 8>}, {pipeline_mode = #tpu.pipeline_mode<synchronous>, transform_indices = @transform_1, window_bounds = array<i64: 8, 128>}, {pipeline_mode = #tpu.pipeline_mode<synchronous>, transform_indices = @transform_2, window_bounds = array<i64: 1, 128>}, {transform_indices = @transform_3, window_bounds = array<i64: 8, 128>}]} {
    %c0 = arith.constant 0 : index
    %c0_0 = arith.constant 0 : index
    %0 = vector.load %arg1[%c0, %c0_0] : memref<8x8xf32, #tpu.memory_space<vmem>>, vector<8x8xf32>
    %1 = arith.truncf %0 : vector<8x8xf32> to vector<8x8xbf16>
    %c0_1 = arith.constant 0 : index
    %c0_2 = arith.constant 0 : index
    %2 = vector.load %arg2[%c0_1, %c0_2] : memref<8x128xbf16, #tpu.memory_space<vmem>>, vector<8x128xbf16>
    %cst = arith.constant dense<0.000000e+00> : vector<8x128xf32>
    %3 = tpu.matmul %1, %2, %cst {dimension_numbers = #tpu.dot_dimension_numbers<[1], [0], [0], [1], [0, 0, 1, 1], [], []>} : vector<8x8xbf16>, vector<8x128xbf16>, vector<8x128xf32> -> vector<8x128xf32>
    %c0_3 = arith.constant 0 : index
    %c0_4 = arith.constant 0 : index
    %4 = vector.load %arg3[%c0_3, %c0_4] : memref<1x128xf32, #tpu.memory_space<vmem>>, vector<1x128xf32>
    %5 = vector.broadcast %4 : vector<1x128xf32> to vector<8x128xf32>
    %6 = arith.addf %3, %5 : vector<8x128xf32>
    %c0_5 = arith.constant 0 : index
    %c0_6 = arith.constant 0 : index
    %7 = vector.load %arg4[%c0_5, %c0_6] : memref<8x128xf32, #tpu.memory_space<vmem>>, vector<8x128xf32>
    tpu.vector_store %arg4[%c0_5, %c0_6], %6 {strides = array<i32>} : memref<8x128xf32, #tpu.memory_space<vmem>>, vector<8x128xf32>,
    return
  }
  func.func @transform_0(%arg0: i32) -> (i32, i32) {
    %c0_i32 = arith.constant 0 : i32
    %c0_i32_0 = arith.constant 0 : i32
    return %arg0, %c0_i32 : i32, i32
  }
  func.func @transform_1(%arg0: i32) -> (i32, i32) {
    %c0_i32 = arith.constant 0 : i32
    %c0_i32_0 = arith.constant 0 : i32
    %c0_i32_1 = arith.constant 0 : i32
    return %c0_i32, %c0_i32_0 : i32, i32
  }
  func.func @transform_2(%arg0: i32) -> (i32, i32) {
    %c0_i32 = arith.constant 0 : i32
    %c0_i32_0 = arith.constant 0 : i32
    %c0_i32_1 = arith.constant 0 : i32
    return %c0_i32, %c0_i32_0 : i32, i32
  }
  func.func @transform_3(%arg0: i32) -> (i32, i32) {
    %c0_i32 = arith.constant 0 : i32
    %c0_i32_0 = arith.constant 0 : i32
    return %arg0, %c0_i32 : i32, i32
  }
}

module attributes {stable_mosaic.version = 11 : i64} {
  func.func @_linear_kernel(%arg0: i32, %arg1: memref<16x32xf32, #tpu.memory_space<vmem>>, %arg2: memref<32x128xbf16, #tpu.memory_space<vmem>>, %arg3: memref<1x128xf32, #tpu.memory_space<vmem>>, %arg4: memref<16x128xf32, #tpu.memory_space<vmem>>) attributes {dimension_semantics = [#tpu.dimension_semantics<parallel>], iteration_bounds = array<i64: 1>, scalar_prefetch = 0 : i64, scratch_operands = 0 : i64, tpu.core_type = #tpu.core_type<tc>, window_params = [{transform_indices = @transform_0, window_bounds = array<i64: 16, 32>}, {pipeline_mode = #tpu.pipeline_mode<synchronous>, transform_indices = @transform_1, window_bounds = array<i64: 32, 128>}, {pipeline_mode = #tpu.pipeline_mode<synchronous>, transform_indices = @transform_2, window_bounds = array<i64: 1, 128>}, {transform_indices = @transform_3, window_bounds = array<i64: 16, 128>}]} {
    %c0 = arith.constant 0 : index
    %c0_0 = arith.constant 0 : index
    %0 = vector.load %arg1[%c0, %c0_0] : memref<16x32xf32, #tpu.memory_space<vmem>>, vector<16x32xf32>
    %1 = arith.truncf %0 : vector<16x32xf32> to vector<16x32xbf16>
    %c0_1 = arith.constant 0 : index
    %c0_2 = arith.constant 0 : index
    %2 = vector.load %arg2[%c0_1, %c0_2] : memref<32x128xbf16, #tpu.memory_space<vmem>>, vector<32x128xbf16>
    %cst = arith.constant dense<0.000000e+00> : vector<16x128xf32>
    %3 = tpu.matmul %1, %2, %cst {dimension_numbers = #tpu.dot_dimension_numbers<[1], [0], [0], [1], [0, 0, 1, 1], [], []>} : vector<16x32xbf16>, vector<32x128xbf16>, vector<16x128xf32> -> vector<16x128xf32>
    %c0_3 = arith.constant 0 : index
    %c0_4 = arith.constant 0 : index
    %4 = vector.load %arg3[%c0_3, %c0_4] : memref<1x128xf32, #tpu.memory_space<vmem>>, vector<1x128xf32>
    %5 = vector.broadcast %4 : vector<1x128xf32> to vector<16x128xf32>
    %6 = arith.addf %3, %5 : vector<16x128xf32>
    %c0_5 = arith.constant 0 : index
    %c0_6 = arith.constant 0 : index
    %7 = vector.load %arg4[%c0_5, %c0_6] : memref<16x128xf32, #tpu.memory_space<vmem>>, vector<16x128xf32>
    tpu.vector_store %arg4[%c0_5, %c0_6], %6 {strides = array<i32>} : memref<16x128xf32, #tpu.memory_space<vmem>>, vector<16x128xf32>,
    return
  }
  func.func @transform_0(%arg0: i32) -> (i32, i32) {
    %c0_i32 = arith.constant 0 : i32
    %c0_i32_0 = arith.constant 0 : i32
    return %arg0, %c0_i32 : i32, i32
  }
  func.func @transform_1(%arg0: i32) -> (i32, i32) {
    %c0_i32 = arith.constant 0 : i32
    %c0_i32_0 = arith.constant 0 : i32
    %c0_i32_1 = arith.constant 0 : i32
    return %c0_i32, %c0_i32_0 : i32, i32
  }
  func.func @transform_2(%arg0: i32) -> (i32, i32) {
    %c0_i32 = arith.constant 0 : i32
    %c0_i32_0 = arith.constant 0 : i32
    %c0_i32_1 = arith.constant 0 : i32
    return %c0_i32, %c0_i32_0 : i32, i32
  }
  func.func @transform_3(%arg0: i32) -> (i32, i32) {
    %c0_i32 = arith.constant 0 : i32
    %c0_i32_0 = arith.constant 0 : i32
    return %arg0, %c0_i32 : i32, i32
  }
}

module attributes {stable_mosaic.version = 11 : i64} {
  func.func @_fused_layer_kernel(%arg0: i32, %arg1: i32, %arg2: memref<1x8x8x32xbf16, #tpu.memory_space<vmem>>, %arg3: memref<1x8x128xf32, #tpu.memory_space<vmem>>, %arg4: memref<1x8x32xf32, #tpu.memory_space<vmem>>, %arg5: memref<32x32xbf16, #tpu.memory_space<vmem>>, %arg6: memref<1x32xf32, #tpu.memory_space<vmem>>, %arg7: memref<1x8x32xf32, #tpu.memory_space<vmem>>, %arg8: memref<1x8x8x32xbf16, #tpu.memory_space<vmem>>) attributes {dimension_semantics = [#tpu.dimension_semantics<parallel>, #tpu.dimension_semantics<parallel>], iteration_bounds = array<i64: 2, 1>, scalar_prefetch = 0 : i64, scratch_operands = 0 : i64, tpu.core_type = #tpu.core_type<tc>, window_params = [{transform_indices = @transform_0, window_bounds = array<i64: 1, 8, 8, 32>}, {transform_indices = @transform_1, window_bounds = array<i64: 1, 8, 128>}, {transform_indices = @transform_2, window_bounds = array<i64: 1, 8, 32>}, {pipeline_mode = #tpu.pipeline_mode<synchronous>, transform_indices = @transform_3, window_bounds = array<i64: 32, 32>}, {pipeline_mode = #tpu.pipeline_mode<synchronous>, transform_indices = @transform_4, window_bounds = array<i64: 1, 32>}, {transform_indices = @transform_5, window_bounds = array<i64: 1, 8, 32>}, {transform_indices = @transform_6, window_bounds = array<i64: 1, 8, 8, 32>}]} {
    %c8_i32 = arith.constant 8 : i32
    %0 = arith.muli %arg1, %c8_i32 : i32
    %1 = tpu.assume_multiple %0, 8 : i32
    %c0 = arith.constant 0 : index
    %c0_0 = arith.constant 0 : index
    %c0_1 = arith.constant 0 : index
    %c0_2 = arith.constant 0 : index
    %2 = vector.load %arg2[%c0, %c0_0, %c0_1, %c0_2] : memref<1x8x8x32xbf16, #tpu.memory_space<vmem>>, vector<1x8x8x32xbf16>
    %3 = vector.shape_cast %2 : vector<1x8x8x32xbf16> to vector<8x8x32xbf16>
    %4 = arith.extf %3 : vector<8x8x32xbf16> to vector<8x8x32xf32>
    %5 = arith.negf %4 : vector<8x8x32xf32>
    %6 = math.exp %5 : vector<8x8x32xf32>
    %cst = arith.constant 1.000000e+00 : f32
    %7 = vector.broadcast %cst : f32 to vector<8x8x32xf32>
    %8 = arith.addf %7, %6 : vector<8x8x32xf32>
    %9 = arith.divf %7, %8 : vector<8x8x32xf32>
    %c0_3 = arith.constant 0 : index
    %c0_4 = arith.constant 0 : index
    %c0_5 = arith.constant 0 : index
    %10 = vector.load %arg3[%c0_3, %c0_4, %c0_5] : memref<1x8x128xf32, #tpu.memory_space<vmem>>, vector<1x8x128xf32>
    %11 = vector.shape_cast %10 : vector<1x8x128xf32> to vector<8x128xf32>
    %c0_6 = arith.constant 0 : index
    %12 = arith.index_cast %1 : i32 to index
    %c0_7 = arith.constant 0 : index
    %13 = vector.load %arg3[%c0_6, %12, %c0_7] : memref<1x8x128xf32, #tpu.memory_space<vmem>>, vector<1x8x128xf32>
    %14 = vector.shape_cast %13 : vector<1x8x128xf32> to vector<8x128xf32>
    %15 = vector.extract_strided_slice %14 {offsets = [0, 0], sizes = [8, 32], strides = [1, 1]} : vector<8x128xf32> to vector<8x32xf32>
    %16 = vector.extract_strided_slice %14 {offsets = [0, 64], sizes = [8, 32], strides = [1, 1]} : vector<8x128xf32> to vector<8x32xf32>
    %17 = vector.extract_strided_slice %11 {offsets = [0, 32], sizes = [8, 32], strides = [1, 1]} : vector<8x128xf32> to vector<8x32xf32>
    %18 = vector.extract_strided_slice %11 {offsets = [0, 96], sizes = [8, 32], strides = [1, 1]} : vector<8x128xf32> to vector<8x32xf32>
    %19 = vector.shape_cast %17 : vector<8x32xf32> to vector<1x8x32xf32>
    %20 = vector.broadcast %19 : vector<1x8x32xf32> to vector<8x8x32xf32>
    %21 = arith.mulf %9, %20 : vector<8x8x32xf32>
    %cst_8 = arith.constant dense<0.000000e+00> : vector<8x32xf32>
    %22 = vector.multi_reduction <add>, %21, %cst_8 [1] : vector<8x8x32xf32> to vector<8x32xf32>
    %cst_9 = arith.constant dense<0.000000e+00> : vector<8x32xf32>
    %23 = vector.multi_reduction <add>, %9, %cst_9 [1] : vector<8x8x32xf32> to vector<8x32xf32>
    %cst_10 = arith.constant 9.99999968E-21 : f32
    %24 = vector.broadcast %cst_10 : f32 to vector<8x32xf32>
    %25 = arith.addf %23, %24 : vector<8x32xf32>
    %26 = arith.divf %22, %25 : vector<8x32xf32>
    %c0_11 = arith.constant 0 : index
    %c0_12 = arith.constant 0 : index
    %c0_13 = arith.constant 0 : index
    %27 = vector.load %arg4[%c0_11, %c0_12, %c0_13] : memref<1x8x32xf32, #tpu.memory_space<vmem>>, vector<1x8x32xf32>
    %28 = vector.shape_cast %27 : vector<1x8x32xf32> to vector<8x32xf32>
    %29 = arith.addf %15, %26 : vector<8x32xf32>
    %cst_14 = arith.constant 0.000000e+00 : f32
    %30 = vector.broadcast %cst_14 : f32 to vector<8x32xf32>
    %31 = arith.maximumf %29, %30 : vector<8x32xf32>
    %32 = arith.addf %28, %31 : vector<8x32xf32>
    %c0_15 = arith.constant 0 : index
    %c0_16 = arith.constant 0 : index
    %c0_17 = arith.constant 0 : index
    %33 = vector.load %arg7[%c0_15, %c0_16, %c0_17] : memref<1x8x32xf32, #tpu.memory_space<vmem>>, vector<1x8x32xf32>
    %34 = vector.shape_cast %33 : vector<1x8x32xf32> to vector<8x32xf32>
    %35 = vector.shape_cast %32 : vector<8x32xf32> to vector<1x8x32xf32>
    tpu.vector_store %arg7[%c0_15, %c0_16, %c0_17], %35 {strides = array<i32>} : memref<1x8x32xf32, #tpu.memory_space<vmem>>, vector<1x8x32xf32>,
    %36 = vector.shape_cast %3 : vector<8x8x32xbf16> to vector<64x32xbf16>
    %c0_18 = arith.constant 0 : index
    %c0_19 = arith.constant 0 : index
    %37 = vector.load %arg5[%c0_18, %c0_19] : memref<32x32xbf16, #tpu.memory_space<vmem>>, vector<32x32xbf16>
    %cst_20 = arith.constant dense<0.000000e+00> : vector<64x32xf32>
    %38 = tpu.matmul %36, %37, %cst_20 {dimension_numbers = #tpu.dot_dimension_numbers<[1], [0], [0], [1], [0, 0, 1, 1], [], []>} : vector<64x32xbf16>, vector<32x32xbf16>, vector<64x32xf32> -> vector<64x32xf32>
    %c0_21 = arith.constant 0 : index
    %c0_22 = arith.constant 0 : index
    %39 = vector.load %arg6[%c0_21, %c0_22] : memref<1x32xf32, #tpu.memory_space<vmem>>, vector<1x32xf32>
    %40 = vector.broadcast %39 : vector<1x32xf32> to vector<64x32xf32>
    %41 = arith.addf %38, %40 : vector<64x32xf32>
    %42 = vector.shape_cast %41 : vector<64x32xf32> to vector<8x8x32xf32>
    %43 = vector.shape_cast %16 : vector<8x32xf32> to vector<8x1x32xf32>
    %44 = vector.broadcast %43 : vector<8x1x32xf32> to vector<8x8x32xf32>
    %45 = arith.addf %42, %44 : vector<8x8x32xf32>
    %46 = vector.shape_cast %18 : vector<8x32xf32> to vector<1x8x32xf32>
    %47 = vector.broadcast %46 : vector<1x8x32xf32> to vector<8x8x32xf32>
    %48 = arith.addf %45, %47 : vector<8x8x32xf32>
    %cst_23 = arith.constant 0.000000e+00 : f32
    %49 = vector.broadcast %cst_23 : f32 to vector<8x8x32xf32>
    %50 = arith.maximumf %48, %49 : vector<8x8x32xf32>
    %51 = arith.addf %4, %50 : vector<8x8x32xf32>
    %52 = arith.truncf %51 : vector<8x8x32xf32> to vector<8x8x32xbf16>
    %c0_24 = arith.constant 0 : index
    %c0_25 = arith.constant 0 : index
    %c0_26 = arith.constant 0 : index
    %c0_27 = arith.constant 0 : index
    %53 = vector.load %arg8[%c0_24, %c0_25, %c0_26, %c0_27] : memref<1x8x8x32xbf16, #tpu.memory_space<vmem>>, vector<1x8x8x32xbf16>
    %54 = vector.shape_cast %53 : vector<1x8x8x32xbf16> to vector<8x8x32xbf16>
    %55 = vector.shape_cast %52 : vector<8x8x32xbf16> to vector<1x8x8x32xbf16>
    tpu.vector_store %arg8[%c0_24, %c0_25, %c0_26, %c0_27], %55 {strides = array<i32>} : memref<1x8x8x32xbf16, #tpu.memory_space<vmem>>, vector<1x8x8x32xbf16>,
    return
  }
  func.func @transform_0(%arg0: i32, %arg1: i32) -> (i32, i32, i32, i32) {
    %c0_i32 = arith.constant 0 : i32
    %c0_i32_0 = arith.constant 0 : i32
    %c0_i32_1 = arith.constant 0 : i32
    return %arg0, %arg1, %c0_i32, %c0_i32_0 : i32, i32, i32, i32
  }
  func.func @transform_1(%arg0: i32, %arg1: i32) -> (i32, i32, i32) {
    %c0_i32 = arith.constant 0 : i32
    %c0_i32_0 = arith.constant 0 : i32
    %c0_i32_1 = arith.constant 0 : i32
    return %arg0, %c0_i32, %c0_i32_0 : i32, i32, i32
  }
  func.func @transform_2(%arg0: i32, %arg1: i32) -> (i32, i32, i32) {
    %c0_i32 = arith.constant 0 : i32
    %c0_i32_0 = arith.constant 0 : i32
    return %arg0, %arg1, %c0_i32 : i32, i32, i32
  }
  func.func @transform_3(%arg0: i32, %arg1: i32) -> (i32, i32) {
    %c0_i32 = arith.constant 0 : i32
    %c0_i32_0 = arith.constant 0 : i32
    %c0_i32_1 = arith.constant 0 : i32
    return %c0_i32, %c0_i32_0 : i32, i32
  }
  func.func @transform_4(%arg0: i32, %arg1: i32) -> (i32, i32) {
    %c0_i32 = arith.constant 0 : i32
    %c0_i32_0 = arith.constant 0 : i32
    %c0_i32_1 = arith.constant 0 : i32
    return %c0_i32, %c0_i32_0 : i32, i32
  }
  func.func @transform_5(%arg0: i32, %arg1: i32) -> (i32, i32, i32) {
    %c0_i32 = arith.constant 0 : i32
    %c0_i32_0 = arith.constant 0 : i32
    return %arg0, %arg1, %c0_i32 : i32, i32, i32
  }
  func.func @transform_6(%arg0: i32, %arg1: i32) -> (i32, i32, i32, i32) {
    %c0_i32 = arith.constant 0 : i32
    %c0_i32_0 = arith.constant 0 : i32
    %c0_i32_1 = arith.constant 0 : i32
    return %arg0, %arg1, %c0_i32, %c0_i32_0 : i32, i32, i32, i32
  }
}

module attributes {stable_mosaic.version = 11 : i64} {
  func.func @_decoder_fused_kernel(%arg0: i32, %arg1: memref<1x64x32xbf16, #tpu.memory_space<vmem>>, %arg2: memref<1x1x64xf32, #tpu.memory_space<vmem>>, %arg3: memref<32x32xbf16, #tpu.memory_space<vmem>>, %arg4: memref<1x32xf32, #tpu.memory_space<vmem>>, %arg5: memref<1x32xbf16, #tpu.memory_space<vmem>>, %arg6: memref<1x1xf32, #tpu.memory_space<vmem>>, %arg7: memref<1x1x64xf32, #tpu.memory_space<vmem>>) attributes {dimension_semantics = [#tpu.dimension_semantics<parallel>], iteration_bounds = array<i64: 2>, scalar_prefetch = 0 : i64, scratch_operands = 0 : i64, tpu.core_type = #tpu.core_type<tc>, window_params = [{transform_indices = @transform_0, window_bounds = array<i64: 1, 64, 32>}, {transform_indices = @transform_1, window_bounds = array<i64: 1, 1, 64>}, {pipeline_mode = #tpu.pipeline_mode<synchronous>, transform_indices = @transform_2, window_bounds = array<i64: 32, 32>}, {pipeline_mode = #tpu.pipeline_mode<synchronous>, transform_indices = @transform_3, window_bounds = array<i64: 1, 32>}, {pipeline_mode = #tpu.pipeline_mode<synchronous>, transform_indices = @transform_4, window_bounds = array<i64: 1, 32>}, {pipeline_mode = #tpu.pipeline_mode<synchronous>, transform_indices = @transform_5, window_bounds = array<i64: 1, 1>}, {transform_indices = @transform_6, window_bounds = array<i64: 1, 1, 64>}]} {
    %c0 = arith.constant 0 : index
    %c0_0 = arith.constant 0 : index
    %c0_1 = arith.constant 0 : index
    %0 = vector.load %arg1[%c0, %c0_0, %c0_1] : memref<1x64x32xbf16, #tpu.memory_space<vmem>>, vector<1x64x32xbf16>
    %1 = vector.shape_cast %0 : vector<1x64x32xbf16> to vector<64x32xbf16>
    %c0_2 = arith.constant 0 : index
    %c0_3 = arith.constant 0 : index
    %2 = vector.load %arg3[%c0_2, %c0_3] : memref<32x32xbf16, #tpu.memory_space<vmem>>, vector<32x32xbf16>
    %cst = arith.constant dense<0.000000e+00> : vector<64x32xf32>
    %3 = tpu.matmul %1, %2, %cst {dimension_numbers = #tpu.dot_dimension_numbers<[1], [0], [0], [1], [0, 0, 1, 1], [], []>} : vector<64x32xbf16>, vector<32x32xbf16>, vector<64x32xf32> -> vector<64x32xf32>
    %c0_4 = arith.constant 0 : index
    %c0_5 = arith.constant 0 : index
    %4 = vector.load %arg4[%c0_4, %c0_5] : memref<1x32xf32, #tpu.memory_space<vmem>>, vector<1x32xf32>
    %5 = vector.broadcast %4 : vector<1x32xf32> to vector<64x32xf32>
    %6 = arith.addf %3, %5 : vector<64x32xf32>
    %cst_6 = arith.constant 0.000000e+00 : f32
    %7 = vector.broadcast %cst_6 : f32 to vector<64x32xf32>
    %8 = arith.maximumf %6, %7 : vector<64x32xf32>
    %c0_7 = arith.constant 0 : index
    %c0_8 = arith.constant 0 : index
    %9 = vector.load %arg5[%c0_7, %c0_8] : memref<1x32xbf16, #tpu.memory_space<vmem>>, vector<1x32xbf16>
    %10 = arith.truncf %8 : vector<64x32xf32> to vector<64x32xbf16>
    %cst_9 = arith.constant dense<0.000000e+00> : vector<1x64xf32>
    %11 = tpu.matmul %9, %10, %cst_9 {dimension_numbers = #tpu.dot_dimension_numbers<[1], [1], [0], [0], [0, 0, 1, 0], [], []>} : vector<1x32xbf16>, vector<64x32xbf16>, vector<1x64xf32> -> vector<1x64xf32>
    %c0_10 = arith.constant 0 : index
    %c0_11 = arith.constant 0 : index
    %12 = vector.load %arg6[%c0_10, %c0_11] : memref<1x1xf32, #tpu.memory_space<vmem>>, vector<1x1xf32>
    %13 = vector.broadcast %12 : vector<1x1xf32> to vector<1x64xf32>
    %14 = arith.addf %11, %13 : vector<1x64xf32>
    %c0_12 = arith.constant 0 : index
    %c0_13 = arith.constant 0 : index
    %c0_14 = arith.constant 0 : index
    %15 = vector.load %arg2[%c0_12, %c0_13, %c0_14] : memref<1x1x64xf32, #tpu.memory_space<vmem>>, vector<1x1x64xf32>
    %16 = vector.shape_cast %15 : vector<1x1x64xf32> to vector<1x64xf32>
    %cst_15 = arith.constant 5.000000e-01 : f32
    %17 = vector.broadcast %cst_15 : f32 to vector<1x64xf32>
    %18 = arith.cmpf ogt, %16, %17 : vector<1x64xf32>
    %cst_16 = arith.constant -1.000000e+30 : f32
    %19 = vector.broadcast %cst_16 : f32 to vector<1x64xf32>
    %20 = arith.select %18, %19, %14 : vector<1x64xi1>, vector<1x64xf32>
    %cst_17 = arith.constant dense<0xFF800000> : vector<1xf32>
    %21 = vector.multi_reduction <maximumf>, %20, %cst_17 [1] : vector<1x64xf32> to vector<1xf32>
    %22 = vector.shape_cast %21 : vector<1xf32> to vector<1x1xf32>
    %23 = vector.broadcast %22 : vector<1x1xf32> to vector<1x64xf32>
    %24 = arith.subf %20, %23 : vector<1x64xf32>
    %25 = math.exp %24 : vector<1x64xf32>
    %cst_18 = arith.constant dense<0.000000e+00> : vector<1xf32>
    %26 = vector.multi_reduction <add>, %25, %cst_18 [1] : vector<1x64xf32> to vector<1xf32>
    %27 = vector.shape_cast %26 : vector<1xf32> to vector<1x1xf32>
    %28 = math.log %27 : vector<1x1xf32>
    %29 = arith.addf %28, %22 : vector<1x1xf32>
    %30 = vector.broadcast %29 : vector<1x1xf32> to vector<1x64xf32>
    %31 = arith.subf %20, %30 : vector<1x64xf32>
    %c0_19 = arith.constant 0 : index
    %c0_20 = arith.constant 0 : index
    %c0_21 = arith.constant 0 : index
    %32 = vector.load %arg7[%c0_19, %c0_20, %c0_21] : memref<1x1x64xf32, #tpu.memory_space<vmem>>, vector<1x1x64xf32>
    %33 = vector.shape_cast %32 : vector<1x1x64xf32> to vector<1x64xf32>
    %34 = vector.shape_cast %31 : vector<1x64xf32> to vector<1x1x64xf32>
    tpu.vector_store %arg7[%c0_19, %c0_20, %c0_21], %34 {strides = array<i32>} : memref<1x1x64xf32, #tpu.memory_space<vmem>>, vector<1x1x64xf32>,
    return
  }
  func.func @transform_0(%arg0: i32) -> (i32, i32, i32) {
    %c0_i32 = arith.constant 0 : i32
    %c0_i32_0 = arith.constant 0 : i32
    %c0_i32_1 = arith.constant 0 : i32
    return %arg0, %c0_i32, %c0_i32_0 : i32, i32, i32
  }
  func.func @transform_1(%arg0: i32) -> (i32, i32, i32) {
    %c0_i32 = arith.constant 0 : i32
    %c0_i32_0 = arith.constant 0 : i32
    %c0_i32_1 = arith.constant 0 : i32
    return %arg0, %c0_i32, %c0_i32_0 : i32, i32, i32
  }
  func.func @transform_2(%arg0: i32) -> (i32, i32) {
    %c0_i32 = arith.constant 0 : i32
    %c0_i32_0 = arith.constant 0 : i32
    %c0_i32_1 = arith.constant 0 : i32
    return %c0_i32, %c0_i32_0 : i32, i32
  }
  func.func @transform_3(%arg0: i32) -> (i32, i32) {
    %c0_i32 = arith.constant 0 : i32
    %c0_i32_0 = arith.constant 0 : i32
    %c0_i32_1 = arith.constant 0 : i32
    return %c0_i32, %c0_i32_0 : i32, i32
  }
  func.func @transform_4(%arg0: i32) -> (i32, i32) {
    %c0_i32 = arith.constant 0 : i32
    %c0_i32_0 = arith.constant 0 : i32
    %c0_i32_1 = arith.constant 0 : i32
    return %c0_i32, %c0_i32_0 : i32, i32
  }
  func.func @transform_5(%arg0: i32) -> (i32, i32) {
    %c0_i32 = arith.constant 0 : i32
    %c0_i32_0 = arith.constant 0 : i32
    %c0_i32_1 = arith.constant 0 : i32
    return %c0_i32, %c0_i32_0 : i32, i32
  }
  func.func @transform_6(%arg0: i32) -> (i32, i32, i32) {
    %c0_i32 = arith.constant 0 : i32
    %c0_i32_0 = arith.constant 0 : i32
    %c0_i32_1 = arith.constant 0 : i32
    return %arg0, %c0_i32, %c0_i32_0 : i32, i32, i32
  }
}

</mosaic_0001>

<llo_original>
// kernel: tile.18
$region0: #{tile.18}
  #allocation0 [shape = 's32[1]{0}', space=sflag, size = 0x4, scoped, tag = 'scoped memory for tile.18']
  %s0 = inlined_call_operand.vmem [shape: f32[32], index: 0, kind: input, shape index: {}]
  %s1 = inlined_call_operand.vmem [shape: f32[4,32], index: 1, kind: output, shape index: {}]
  // Predicated region
  $region2: #{tile.18} parent=0 // pred_check
    _
  $region3: #{tile.18} parent=0 // pred_check_branch
    %3 = sbr.rel (0) target = $region5
  $region4: #{tile.18} parent=0 // pred_region
    _
  $region5: #{tile.18} parent=0 // pred_fallthru
    _
  %v4 = vld [vmem:[%s0] ss:$0 sm:$0xff]
  %5 = vst [vmem:[%s1] sm:$0xf] %v4

// kernel: tile.19
$region0: #{tile.19}
  %s0 = inlined_call_operand.vmem [shape: f32[4,32], index: 0, kind: input, shape index: {}]
  %s1 = inlined_call_operand.hbm [shape: f32[1,128], index: 1, kind: output, shape index: {}]
  $region1: #{tile.19} parent=0
    #allocation0 [shape = 'u8[512]{0}', space=vmem, size = 0x400, scoped, tag = 'operand span for operand 1']
    #allocation1 [shape = 's32[1]{0}', space=sflag, size = 0x4, scoped, tag = 'scoped memory for tile.19']
    #allocation2 [shape = 'u8[4096]{0}', space=vmem, size = 0x1000, scoped, tag = 'scoped mem for output reshape']
    #allocation3 [shape = 'u8[4096]{0}', space=vmem, size = 0x1000, scoped, tag = 'scoped mem for input reshape']
    %2 = vsyncpa [#allocation1], 0
    %s4 = sshllo.u32 0, 4
    %v5 = vld [vmem:[%s0] sm:%s4]
    %6 = vst [vmem:[#allocation3] sm:%s4] %v5
    %v7 = vld [vmem:[#allocation3] sm:$0x1]
    %vm8 = vcmask 261120
    %9 = vst.msk [vmem:[#allocation2] sm:$0x1] %vm8, %v7
    %s10 = scalar_lea.vmem [#allocation3], 3
    %v11 = vld [vmem:[%s10] sm:$0x1]
    %12 = vrot.lane.b32.xlu0 %v11, 96
    %v13 = vpop.permute.xlu0 %12
    %vm14 = vcmask 1048320
    %15 = vst.msk [vmem:[#allocation2] sm:$0x1] %vm14, %v13
    %s16 = scalar_lea.vmem [#allocation3], 2
    %v17 = vld [vmem:[%s16] sm:$0x1]
    %18 = vrot.lane.b32.xlu0 %v17, 64
    %v19 = vpop.permute.xlu0 %18
    %vm20 = vcmask 785920
    %21 = vst.msk [vmem:[#allocation2] sm:$0x1] %vm20, %v19
    %s22 = scalar_lea.vmem [#allocation3], 1
    %v23 = vld [vmem:[%s22] sm:$0x1]
    %24 = vrot.lane.b32.xlu0 %v23, 32
    %v25 = vpop.permute.xlu0 %24
    %vm26 = vcmask 523520
    %27 = vst.msk [vmem:[#allocation2] sm:$0x1] %vm26, %v25
    %s29 = sshllo.u32 0, 1
    %v31 = vld [vmem:[#allocation2] sm:%s29]
    %s32 = sshllo.u32 0, 1
    %33 = vst [vmem:[#allocation0] sm:%s32] %v31
    %s35 = ssub.s32 16, 16
    %36 = vsyncadd [#allocation1], %s35
    %s38 = sshll.u32 [#allocation0], 4
    %s39 = int_to_ptr.vmem [resolvable:$true] %s38
    %41 = dma.vmem_to_hbm [thread:$0]  %s39, 16, %s1, [#allocation1]
    %42 = dma.done [#allocation1], 16
    %43 = vsyncpa [#allocation1], 1

// kernel: model_forward.8
$region0: #{model_forward.8}
  #allocation0 [shape = 'u32[]', space=smem, size = 0x4, offset = 0x4, fixed_abs, tag = 'smem constant byte address 0x4 - core index']
  #allocation1 [shape = 'u32[144,128]{1,0:T(1,128)}', space=vmem, size = 0x12000, scoped, tag = 'internal scratch']
  %s0 = inlined_call_operand.hbm [shape: f32[32,12], index: 0, kind: input, shape index: {}]
  %s1 = inlined_call_operand.hbm [shape: bf16[12,128], index: 1, kind: input, shape index: {}]
  %s2 = inlined_call_operand.hbm [shape: f32[1,128], index: 2, kind: input, shape index: {}]
  %s3 = inlined_call_operand.hbm [shape: bf16[32,128], index: 3, kind: output, shape index: {}]
  %s4 = sld [smem:[#allocation0]]
  $region34: #{model_forward.8} parent=0
    _
  %s6 = ssub.s32 1, %s4
  %s7 = scalar_select 0, %s6, %s4
  $region1: #{model_forward.8} parent=0
    #allocation2 [shape = 'u8[16384]{0}', space=vmem, size = 0x4000, scoped, tag = 'input window, operand 0, single buffered']
    #allocation3 [shape = 's32[1]{0}', space=sflag, size = 0x4, scoped, tag = 'scoped memory for model_forward.8']
    #allocation4 [shape = 's32[1]{0}', space=sflag, size = 0x4, scoped, tag = 'scoped memory for model_forward.8']
    #allocation5 [shape = 'u8[4096]{0}', space=vmem, size = 0x1000, scoped, tag = 'input window, operand 1, single buffered']
    #allocation6 [shape = 's32[1]{0}', space=sflag, size = 0x4, scoped, tag = 'scoped memory for model_forward.8']
    #allocation7 [shape = 'u8[512]{0}', space=vmem, size = 0x400, scoped, tag = 'input window, operand 2, single buffered']
    #allocation8 [shape = 'u8[8192]{0}', space=vmem, size = 0x2000, scoped, tag = 'output window, operand 0, single buffered']
    %8 = vsyncpa [#allocation3], 0
    %9 = vsyncpa [#allocation6], 0
    %10 = vsyncpa [#allocation4], 0
    // Predicated region
    $region2: #{model_forward.8} parent=1 // pred_check
      _
    $region3: #{model_forward.8} parent=1 // pred_check_branch
      %12 = sbr.rel (0) target = $region5
    $region4: #{model_forward.8} parent=1 // pred_region
      %s14 = ssub.s32 512, 512
      %15 = vsyncadd [#allocation3], %s14
      %s16 = sshll.u32 [#allocation2], 4
      %s17 = int_to_ptr.vmem [resolvable:$true] %s16
      %22 = dma.hbm_to_vmem [thread:$0]  %s0, 512, %s17, [#allocation3], 128, 128, 8
    $region5: #{model_forward.8} parent=1 // pred_fallthru
      _
    // Predicated region
    $region6: #{model_forward.8} parent=1 // pred_check
      _
    $region7: #{model_forward.8} parent=1 // pred_check_branch
      %24 = sbr.rel (0) target = $region9
    $region8: #{model_forward.8} parent=1 // pred_region
      %s26 = ssub.s32 128, 128
      %27 = vsyncadd [#allocation6], %s26
      %s28 = sshll.u32 [#allocation5], 4
      %s29 = int_to_ptr.vmem [resolvable:$true] %s28
      %34 = dma.hbm_to_vmem [thread:$0]  %s1, 128, %s29, [#allocation6], 64, 64, 4
    $region9: #{model_forward.8} parent=1 // pred_fallthru
      _
    // Predicated region
    $region10: #{model_forward.8} parent=1 // pred_check
      _
    $region11: #{model_forward.8} parent=1 // pred_check_branch
      %36 = sbr.rel (0) target = $region13
    $region12: #{model_forward.8} parent=1 // pred_region
      %s38 = ssub.s32 16, 16
      %39 = vsyncadd [#allocation6], %s38
      %s41 = sshll.u32 [#allocation7], 4
      %s42 = int_to_ptr.vmem [resolvable:$true] %s41
      %44 = dma.hbm_to_vmem [thread:$0]  %s2, 16, %s42, [#allocation6]
    $region13: #{model_forward.8} parent=1 // pred_fallthru
      _
    // Predicated region
    $region14: #{model_forward.8} parent=1 // pred_check
      _
    $region15: #{model_forward.8} parent=1 // pred_check_branch
      %46 = sbr.rel (0) target = $region17
    $region16: #{model_forward.8} parent=1 // pred_region
      %47 = dma.done [#allocation3], 512
    $region17: #{model_forward.8} parent=1 // pred_fallthru
      _
    // Predicated region
    $region18: #{model_forward.8} parent=1 // pred_check
      _
    $region19: #{model_forward.8} parent=1 // pred_check_branch
      %49 = sbr.rel (0) target = $region21
    $region20: #{model_forward.8} parent=1 // pred_region
      %50 = dma.done [#allocation6], 128
    $region21: #{model_forward.8} parent=1 // pred_fallthru
      _
    // Predicated region
    $region22: #{model_forward.8} parent=1 // pred_check
      _
    $region23: #{model_forward.8} parent=1 // pred_check_branch
      %52 = sbr.rel (0) target = $region25
    $region24: #{model_forward.8} parent=1 // pred_region
      %53 = dma.done [#allocation6], 16
    $region25: #{model_forward.8} parent=1 // pred_fallthru
      _
    %v55 = vld [vmem:[#allocation2] sm:$0xff]
    %v56 = vld [vmem:[#allocation2 + $0x8] sm:$0xff]
    %v57 = vld [vmem:[#allocation2 + $0x10] sm:$0xff]
    %v58 = vld [vmem:[#allocation2 + $0x18] sm:$0xff]
    %v59 = vpack.c.bf16 %v56, %v55
    %v60 = vpack.c.bf16 %v58, %v57
    %v61 = vld [vmem:[#allocation5] sm:$0xf]
    %v62 = vld [vmem:[#allocation5 + $0x4] sm:$0x3]
    %v63 = vld [vmem:[#allocation7] sm:$0x1]
    %v65 = vlaneseq
    %v66 = vshrl.u32 %v65, 7
    %v67 = vsub.s32 0, %v66
    %v68 = vrot.slane %v63, %v67
    %v72 = vunpack.c.l.b16 %v61
    %v73 = vunpack.c.l.b16 %v62
    %v74 = vpack.c.b16 %v73, %v72
    %vm75 = vcmask 97280
    %v77 = vsel %vm75, %v59, 0
    %v80 = vsel %vm75, %v60, 0
    %vm82 = vcmask 1045504
    %v84 = vsel %vm82, %v74, 0
    %86 = vmatprep.subr.bf16.mxu0 0
    %87 = vmatpush1.bf16.msra.mxu0 %v84
    %88 = vmatprep.subr.bf16.mxu0 0
    %89 = vmatpush1.bf16.msra.mxu0 0
    %90 = vmatprep.subr.bf16.mxu0 0
    %91 = vmatpush1.bf16.msra.mxu0 0
    %92 = vmatprep.subr.bf16.mxu0 0
    %93 = vmatpush1.bf16.msra.mxu0 0
    %94 = vmatprep.subr.bf16.mxu0 0
    %95 = vmatpush1.bf16.msra.mxu0 0
    %96 = vmatprep.subr.bf16.mxu0 0
    %97 = vmatpush1.bf16.msra.mxu0 0
    %98 = vmatprep.subr.bf16.mxu0 0
    %99 = vmatpush1.bf16.msra.mxu0 0
    %100 = vmatprep.subr.bf16.mxu0 0
    %101 = vmatpush1.bf16.msra.mxu0 0
    %102 = vmatprep.subr.bf16.mxu0 0
    %103 = vmatpush1.bf16.msra.mxu0 0
    %104 = vmatprep.subr.bf16.mxu0 0
    %105 = vmatpush1.bf16.msra.mxu0 0
    %106 = vmatprep.subr.bf16.mxu0 0
    %107 = vmatpush1.bf16.msra.mxu0 0
    %108 = vmatprep.subr.bf16.mxu0 0
    %109 = vmatpush1.bf16.msra.mxu0 0
    %110 = vmatprep.subr.bf16.mxu0 0
    %111 = vmatpush1.bf16.msra.mxu0 0
    %112 = vmatprep.subr.bf16.mxu0 0
    %113 = vmatpush1.bf16.msra.mxu0 0
    %114 = vmatprep.subr.bf16.mxu0 0
    %115 = vmatpush1.bf16.msra.mxu0 0
    %116 = vmatprep.subr.bf16.mxu0 0
    %117 = vmatpush1.bf16.msra.mxu0 0
    %118 = vmatprep.mubr.bf16.mxu0 0
    %119 = vmatmul.mubr.bf16.gmra.mrb[0].mxu0 %v77
    %v120 = vpop.f32.mrb[0].mxu0
    %v121 = vadd.f32 %v68, %v120
    %v122 = vpop.f32.mrb[0].mxu0
    %v123 = vpop.f32.mrb[0].mxu0
    %v124 = vadd.f32 %v68, %v123
    %v125 = vpop.f32.mrb[0].mxu0
    %126 = vmatprep.mubr.bf16.mxu0 0
    %127 = vmatmul.mubr.bf16.gmra.mrb[0].mxu0 %v80
    %v128 = vpop.f32.mrb[0].mxu0
    %v129 = vadd.f32 %v68, %v128
    %v130 = vpop.f32.mrb[0].mxu0
    %v131 = vpop.f32.mrb[0].mxu0
    %v132 = vadd.f32 %v68, %v131
    %v133 = vpop.f32.mrb[0].mxu0
    %134 = vdwg.mxu0
    %v135 = vpack.c.bf16 %v124, %v121
    %v136 = vpack.c.bf16 %v132, %v129
    %v139 = vunpack.c.l.b16 %v135
    %v140 = vunpack.c.h.b16 %v135
    %v141 = vunpack.c.l.b16 %v136
    %v142 = vunpack.c.h.b16 %v136
    %v143 = vpack.c.b16 %v139, %v139
    %v144 = vpack.c.b16 %v140, %v140
    %v145 = vpack.c.b16 %v141, %v141
    %v146 = vpack.c.b16 %v142, %v142
    %151 = vst [vmem:[#allocation8] sm:$0xf] %v143
    %152 = vst [vmem:[#allocation8 + $0x4] sm:$0xf] %v144
    %153 = vst [vmem:[#allocation8 + $0x8] sm:$0xf] %v145
    %154 = vst [vmem:[#allocation8 + $0xc] sm:$0xf] %v146
    // Predicated region
    $region26: #{model_forward.8} parent=1 // pred_check
      _
    $region27: #{model_forward.8} parent=1 // pred_check_branch
      %156 = sbr.rel (0) target = $region29
    $region28: #{model_forward.8} parent=1 // pred_region
      %s158 = ssub.s32 256, 256
      %159 = vsyncadd [#allocation4], %s158
      %s160 = sshll.u32 [#allocation8], 4
      %s161 = int_to_ptr.vmem [resolvable:$true] %s160
      %166 = dma.vmem_to_hbm [thread:$0]  %s161, 256, %s3, [#allocation4], 64, 64, 4
    $region29: #{model_forward.8} parent=1 // pred_fallthru
      _
    // Predicated region
    $region30: #{model_forward.8} parent=1 // pred_check
      _
    $region31: #{model_forward.8} parent=1 // pred_check_branch
      %168 = sbr.rel (0) target = $region33
    $region32: #{model_forward.8} parent=1 // pred_region
      %169 = dma.done [#allocation4], 256
    $region33: #{model_forward.8} parent=1 // pred_fallthru
      _
    %170 = vsyncpa [#allocation3], 1
    %171 = vsyncpa [#allocation6], 1
    %172 = vsyncpa [#allocation4], 1

// kernel: model_forward.7
$region0: #{model_forward.7}
  #allocation0 [shape = 'u32[]', space=smem, size = 0x4, offset = 0x4, fixed_abs, tag = 'smem constant byte address 0x4 - core index']
  #allocation1 [shape = 'u32[144,128]{1,0:T(1,128)}', space=vmem, size = 0x12000, scoped, tag = 'internal scratch']
  %s0 = inlined_call_operand.hbm [shape: f32[8,8], index: 0, kind: input, shape index: {}]
  %s1 = inlined_call_operand.hbm [shape: bf16[8,128], index: 1, kind: input, shape index: {}]
  %s2 = inlined_call_operand.hbm [shape: f32[1,128], index: 2, kind: input, shape index: {}]
  %s3 = inlined_call_operand.hbm [shape: f32[8,128], index: 3, kind: output, shape index: {}]
  %s4 = sld [smem:[#allocation0]]
  $region34: #{model_forward.7} parent=0
    _
  %s6 = ssub.s32 1, %s4
  %s7 = scalar_select 0, %s6, %s4
  $region1: #{model_forward.7} parent=0
    #allocation2 [shape = 'u8[4096]{0}', space=vmem, size = 0x1000, scoped, tag = 'input window, operand 0, single buffered']
    #allocation3 [shape = 's32[1]{0}', space=sflag, size = 0x4, scoped, tag = 'scoped memory for model_forward.7']
    #allocation4 [shape = 's32[1]{0}', space=sflag, size = 0x4, scoped, tag = 'scoped memory for model_forward.7']
    #allocation5 [shape = 'u8[2048]{0}', space=vmem, size = 0x800, scoped, tag = 'input window, operand 1, single buffered']
    #allocation6 [shape = 's32[1]{0}', space=sflag, size = 0x4, scoped, tag = 'scoped memory for model_forward.7']
    #allocation7 [shape = 'u8[512]{0}', space=vmem, size = 0x400, scoped, tag = 'input window, operand 2, single buffered']
    #allocation8 [shape = 'u8[4096]{0}', space=vmem, size = 0x1000, scoped, tag = 'output window, operand 0, single buffered']
    %8 = vsyncpa [#allocation3], 0
    %9 = vsyncpa [#allocation6], 0
    %10 = vsyncpa [#allocation4], 0
    // Predicated region
    $region2: #{model_forward.7} parent=1 // pred_check
      _
    $region3: #{model_forward.7} parent=1 // pred_check_branch
      %12 = sbr.rel (0) target = $region5
    $region4: #{model_forward.7} parent=1 // pred_region
      %s14 = ssub.s32 128, 128
      %15 = vsyncadd [#allocation3], %s14
      %s17 = sshll.u32 [#allocation2], 4
      %s18 = int_to_ptr.vmem [resolvable:$true] %s17
      %20 = dma.hbm_to_vmem [thread:$0]  %s0, 128, %s18, [#allocation3]
    $region5: #{model_forward.7} parent=1 // pred_fallthru
      _
    // Predicated region
    $region6: #{model_forward.7} parent=1 // pred_check
      _
    $region7: #{model_forward.7} parent=1 // pred_check_branch
      %22 = sbr.rel (0) target = $region9
    $region8: #{model_forward.7} parent=1 // pred_region
      %s24 = ssub.s32 64, 64
      %25 = vsyncadd [#allocation6], %s24
      %s27 = sshll.u32 [#allocation5], 4
      %s28 = int_to_ptr.vmem [resolvable:$true] %s27
      %30 = dma.hbm_to_vmem [thread:$0]  %s1, 64, %s28, [#allocation6]
    $region9: #{model_forward.7} parent=1 // pred_fallthru
      _
    // Predicated region
    $region10: #{model_forward.7} parent=1 // pred_check
      _
    $region11: #{model_forward.7} parent=1 // pred_check_branch
      %32 = sbr.rel (0) target = $region13
    $region12: #{model_forward.7} parent=1 // pred_region
      %s34 = ssub.s32 16, 16
      %35 = vsyncadd [#allocation6], %s34
      %s37 = sshll.u32 [#allocation7], 4
      %s38 = int_to_ptr.vmem [resolvable:$true] %s37
      %40 = dma.hbm_to_vmem [thread:$0]  %s2, 16, %s38, [#allocation6]
    $region13: #{model_forward.7} parent=1 // pred_fallthru
      _
    // Predicated region
    $region14: #{model_forward.7} parent=1 // pred_check
      _
    $region15: #{model_forward.7} parent=1 // pred_check_branch
      %42 = sbr.rel (0) target = $region17
    $region16: #{model_forward.7} parent=1 // pred_region
      %43 = dma.done [#allocation3], 128
    $region17: #{model_forward.7} parent=1 // pred_fallthru
      _
    // Predicated region
    $region18: #{model_forward.7} parent=1 // pred_check
      _
    $region19: #{model_forward.7} parent=1 // pred_check_branch
      %45 = sbr.rel (0) target = $region21
    $region20: #{model_forward.7} parent=1 // pred_region
      %46 = dma.done [#allocation6], 64
    $region21: #{model_forward.7} parent=1 // pred_fallthru
      _
    // Predicated region
    $region22: #{model_forward.7} parent=1 // pred_check
      _
    $region23: #{model_forward.7} parent=1 // pred_check_branch
      %48 = sbr.rel (0) target = $region25
    $region24: #{model_forward.7} parent=1 // pred_region
      %49 = dma.done [#allocation6], 16
    $region25: #{model_forward.7} parent=1 // pred_fallthru
      _
    %v51 = vld [vmem:[#allocation2] sm:$0xff]
    %v52 = vpack.c.bf16 %v51, %v51
    %v53 = vld [vmem:[#allocation5] sm:$0xf]
    %v54 = vld [vmem:[#allocation7] sm:$0x1]
    %v56 = vlaneseq
    %v57 = vshrl.u32 %v56, 7
    %v58 = vsub.s32 0, %v57
    %v59 = vrot.slane %v54, %v58
    %vm61 = vcmask 64512
    %v63 = vsel %vm61, %v52, 0
    %vm65 = vcmask 1043456
    %v67 = vsel %vm65, %v53, 0
    %69 = vmatprep.subr.bf16.mxu0 0
    %70 = vmatpush1.bf16.msra.mxu0 %v67
    %71 = vmatprep.subr.bf16.mxu0 0
    %72 = vmatpush1.bf16.msra.mxu0 0
    %73 = vmatprep.subr.bf16.mxu0 0
    %74 = vmatpush1.bf16.msra.mxu0 0
    %75 = vmatprep.subr.bf16.mxu0 0
    %76 = vmatpush1.bf16.msra.mxu0 0
    %77 = vmatprep.subr.bf16.mxu0 0
    %78 = vmatpush1.bf16.msra.mxu0 0
    %79 = vmatprep.subr.bf16.mxu0 0
    %80 = vmatpush1.bf16.msra.mxu0 0
    %81 = vmatprep.subr.bf16.mxu0 0
    %82 = vmatpush1.bf16.msra.mxu0 0
    %83 = vmatprep.subr.bf16.mxu0 0
    %84 = vmatpush1.bf16.msra.mxu0 0
    %85 = vmatprep.subr.bf16.mxu0 0
    %86 = vmatpush1.bf16.msra.mxu0 0
    %87 = vmatprep.subr.bf16.mxu0 0
    %88 = vmatpush1.bf16.msra.mxu0 0
    %89 = vmatprep.subr.bf16.mxu0 0
    %90 = vmatpush1.bf16.msra.mxu0 0
    %91 = vmatprep.subr.bf16.mxu0 0
    %92 = vmatpush1.bf16.msra.mxu0 0
    %93 = vmatprep.subr.bf16.mxu0 0
    %94 = vmatpush1.bf16.msra.mxu0 0
    %95 = vmatprep.subr.bf16.mxu0 0
    %96 = vmatpush1.bf16.msra.mxu0 0
    %97 = vmatprep.subr.bf16.mxu0 0
    %98 = vmatpush1.bf16.msra.mxu0 0
    %99 = vmatprep.subr.bf16.mxu0 0
    %100 = vmatpush1.bf16.msra.mxu0 0
    %101 = vmatprep.mubr.bf16.mxu0 0
    %102 = vmatmul.mubr.bf16.gmra.mrb[0].mxu0 %v63
    %v103 = vpop.f32.mrb[0].mxu0
    %v104 = vadd.f32 %v59, %v103
    %v105 = vpop.f32.mrb[0].mxu0
    %v106 = vpop.f32.mrb[0].mxu0
    %v107 = vpop.f32.mrb[0].mxu0
    %108 = vdwg.mxu0
    %109 = vst [vmem:[#allocation8] sm:$0xff] %v104
    // Predicated region
    $region26: #{model_forward.7} parent=1 // pred_check
      _
    $region27: #{model_forward.7} parent=1 // pred_check_branch
      %111 = sbr.rel (0) target = $region29
    $region28: #{model_forward.7} parent=1 // pred_region
      %s113 = ssub.s32 128, 128
      %114 = vsyncadd [#allocation4], %s113
      %s116 = sshll.u32 [#allocation8], 4
      %s117 = int_to_ptr.vmem [resolvable:$true] %s116
      %119 = dma.vmem_to_hbm [thread:$0]  %s117, 128, %s3, [#allocation4]
    $region29: #{model_forward.7} parent=1 // pred_fallthru
      _
    // Predicated region
    $region30: #{model_forward.7} parent=1 // pred_check
      _
    $region31: #{model_forward.7} parent=1 // pred_check_branch
      %121 = sbr.rel (0) target = $region33
    $region32: #{model_forward.7} parent=1 // pred_region
      %122 = dma.done [#allocation4], 128
    $region33: #{model_forward.7} parent=1 // pred_fallthru
      _
    %123 = vsyncpa [#allocation3], 1
    %124 = vsyncpa [#allocation6], 1
    %125 = vsyncpa [#allocation4], 1

// kernel: model_forward.9
$region0: #{model_forward.9}
  #allocation0 [shape = 'u32[]', space=smem, size = 0x4, offset = 0x4, fixed_abs, tag = 'smem constant byte address 0x4 - core index']
  #allocation1 [shape = 'u32[144,128]{1,0:T(1,128)}', space=vmem, size = 0x12000, scoped, tag = 'internal scratch']
  %s0 = inlined_call_operand.hbm [shape: f32[16,32], index: 0, kind: input, shape index: {}]
  %s1 = inlined_call_operand.hbm [shape: bf16[32,128], index: 1, kind: input, shape index: {}]
  %s2 = inlined_call_operand.hbm [shape: f32[1,128], index: 2, kind: input, shape index: {}]
  %s3 = inlined_call_operand.hbm [shape: f32[16,128], index: 3, kind: output, shape index: {}]
  %s4 = sld [smem:[#allocation0]]
  $region34: #{model_forward.9} parent=0
    _
  %s6 = ssub.s32 1, %s4
  %s7 = scalar_select 0, %s6, %s4
  $region1: #{model_forward.9} parent=0
    #allocation2 [shape = 'u8[8192]{0}', space=vmem, size = 0x2000, scoped, tag = 'input window, operand 0, single buffered']
    #allocation3 [shape = 's32[1]{0}', space=sflag, size = 0x4, scoped, tag = 'scoped memory for model_forward.9']
    #allocation4 [shape = 's32[1]{0}', space=sflag, size = 0x4, scoped, tag = 'scoped memory for model_forward.9']
    #allocation5 [shape = 'u8[8192]{0}', space=vmem, size = 0x2000, scoped, tag = 'input window, operand 1, single buffered']
    #allocation6 [shape = 's32[1]{0}', space=sflag, size = 0x4, scoped, tag = 'scoped memory for model_forward.9']
    #allocation7 [shape = 'u8[512]{0}', space=vmem, size = 0x400, scoped, tag = 'input window, operand 2, single buffered']
    #allocation8 [shape = 'u8[8192]{0}', space=vmem, size = 0x2000, scoped, tag = 'output window, operand 0, single buffered']
    %8 = vsyncpa [#allocation3], 0
    %9 = vsyncpa [#allocation6], 0
    %10 = vsyncpa [#allocation4], 0
    // Predicated region
    $region2: #{model_forward.9} parent=1 // pred_check
      _
    $region3: #{model_forward.9} parent=1 // pred_check_branch
      %12 = sbr.rel (0) target = $region5
    $region4: #{model_forward.9} parent=1 // pred_region
      %s14 = ssub.s32 256, 256
      %15 = vsyncadd [#allocation3], %s14
      %s16 = sshll.u32 [#allocation2], 4
      %s17 = int_to_ptr.vmem [resolvable:$true] %s16
      %22 = dma.hbm_to_vmem [thread:$0]  %s0, 256, %s17, [#allocation3], 128, 128, 8
    $region5: #{model_forward.9} parent=1 // pred_fallthru
      _
    // Predicated region
    $region6: #{model_forward.9} parent=1 // pred_check
      _
    $region7: #{model_forward.9} parent=1 // pred_check_branch
      %24 = sbr.rel (0) target = $region9
    $region8: #{model_forward.9} parent=1 // pred_region
      %s26 = ssub.s32 256, 256
      %27 = vsyncadd [#allocation6], %s26
      %s28 = sshll.u32 [#allocation5], 4
      %s29 = int_to_ptr.vmem [resolvable:$true] %s28
      %34 = dma.hbm_to_vmem [thread:$0]  %s1, 256, %s29, [#allocation6], 64, 64, 4
    $region9: #{model_forward.9} parent=1 // pred_fallthru
      _
    // Predicated region
    $region10: #{model_forward.9} parent=1 // pred_check
      _
    $region11: #{model_forward.9} parent=1 // pred_check_branch
      %36 = sbr.rel (0) target = $region13
    $region12: #{model_forward.9} parent=1 // pred_region
      %s38 = ssub.s32 16, 16
      %39 = vsyncadd [#allocation6], %s38
      %s41 = sshll.u32 [#allocation7], 4
      %s42 = int_to_ptr.vmem [resolvable:$true] %s41
      %44 = dma.hbm_to_vmem [thread:$0]  %s2, 16, %s42, [#allocation6]
    $region13: #{model_forward.9} parent=1 // pred_fallthru
      _
    // Predicated region
    $region14: #{model_forward.9} parent=1 // pred_check
      _
    $region15: #{model_forward.9} parent=1 // pred_check_branch
      %46 = sbr.rel (0) target = $region17
    $region16: #{model_forward.9} parent=1 // pred_region
      %47 = dma.done [#allocation3], 256
    $region17: #{model_forward.9} parent=1 // pred_fallthru
      _
    // Predicated region
    $region18: #{model_forward.9} parent=1 // pred_check
      _
    $region19: #{model_forward.9} parent=1 // pred_check_branch
      %49 = sbr.rel (0) target = $region21
    $region20: #{model_forward.9} parent=1 // pred_region
      %50 = dma.done [#allocation6], 256
    $region21: #{model_forward.9} parent=1 // pred_fallthru
      _
    // Predicated region
    $region22: #{model_forward.9} parent=1 // pred_check
      _
    $region23: #{model_forward.9} parent=1 // pred_check_branch
      %52 = sbr.rel (0) target = $region25
    $region24: #{model_forward.9} parent=1 // pred_region
      %53 = dma.done [#allocation6], 16
    $region25: #{model_forward.9} parent=1 // pred_fallthru
      _
    %v55 = vld [vmem:[#allocation2] sm:$0xff]
    %v56 = vld [vmem:[#allocation2 + $0x8] sm:$0xff]
    %v57 = vpack.c.bf16 %v56, %v55
    %v58 = vld [vmem:[#allocation5] sm:$0xf]
    %v59 = vld [vmem:[#allocation5 + $0x4] sm:$0xf]
    %v60 = vld [vmem:[#allocation5 + $0x8] sm:$0xf]
    %v61 = vld [vmem:[#allocation5 + $0xc] sm:$0xf]
    %v62 = vld [vmem:[#allocation7] sm:$0x1]
    %v64 = vlaneseq
    %v65 = vshrl.u32 %v64, 7
    %v66 = vsub.s32 0, %v65
    %v67 = vrot.slane %v62, %v66
    %v73 = vunpack.c.l.b16 %v58
    %v74 = vunpack.c.l.b16 %v59
    %v75 = vunpack.c.l.b16 %v60
    %v76 = vunpack.c.l.b16 %v61
    %v77 = vpack.c.b16 %v74, %v73
    %v78 = vpack.c.b16 %v76, %v75
    %vm81 = vcmask 261120
    %v83 = vsel %vm81, %v57, 0
    %85 = vmatprep.subr.bf16.mxu0 0
    %86 = vmatpush1.bf16.msra.mxu0 %v77
    %87 = vmatprep.subr.bf16.mxu0 0
    %88 = vmatpush1.bf16.msra.mxu0 %v78
    %89 = vmatprep.subr.bf16.mxu0 0
    %90 = vmatpush1.bf16.msra.mxu0 0
    %91 = vmatprep.subr.bf16.mxu0 0
    %92 = vmatpush1.bf16.msra.mxu0 0
    %93 = vmatprep.subr.bf16.mxu0 0
    %94 = vmatpush1.bf16.msra.mxu0 0
    %95 = vmatprep.subr.bf16.mxu0 0
    %96 = vmatpush1.bf16.msra.mxu0 0
    %97 = vmatprep.subr.bf16.mxu0 0
    %98 = vmatpush1.bf16.msra.mxu0 0
    %99 = vmatprep.subr.bf16.mxu0 0
    %100 = vmatpush1.bf16.msra.mxu0 0
    %101 = vmatprep.subr.bf16.mxu0 0
    %102 = vmatpush1.bf16.msra.mxu0 0
    %103 = vmatprep.subr.bf16.mxu0 0
    %104 = vmatpush1.bf16.msra.mxu0 0
    %105 = vmatprep.subr.bf16.mxu0 0
    %106 = vmatpush1.bf16.msra.mxu0 0
    %107 = vmatprep.subr.bf16.mxu0 0
    %108 = vmatpush1.bf16.msra.mxu0 0
    %109 = vmatprep.subr.bf16.mxu0 0
    %110 = vmatpush1.bf16.msra.mxu0 0
    %111 = vmatprep.subr.bf16.mxu0 0
    %112 = vmatpush1.bf16.msra.mxu0 0
    %113 = vmatprep.subr.bf16.mxu0 0
    %114 = vmatpush1.bf16.msra.mxu0 0
    %115 = vmatprep.subr.bf16.mxu0 0
    %116 = vmatpush1.bf16.msra.mxu0 0
    %117 = vmatprep.mubr.bf16.mxu0 0
    %118 = vmatmul.mubr.bf16.gmra.mrb[0].mxu0 %v83
    %v119 = vpop.f32.mrb[0].mxu0
    %v120 = vadd.f32 %v67, %v119
    %v121 = vpop.f32.mrb[0].mxu0
    %v122 = vpop.f32.mrb[0].mxu0
    %v123 = vadd.f32 %v67, %v122
    %v124 = vpop.f32.mrb[0].mxu0
    %125 = vdwg.mxu0
    %126 = vst [vmem:[#allocation8] sm:$0xff] %v120
    %127 = vst [vmem:[#allocation8 + $0x8] sm:$0xff] %v123
    // Predicated region
    $region26: #{model_forward.9} parent=1 // pred_check
      _
    $region27: #{model_forward.9} parent=1 // pred_check_branch
      %129 = sbr.rel (0) target = $region29
    $region28: #{model_forward.9} parent=1 // pred_region
      %s131 = ssub.s32 256, 256
      %132 = vsyncadd [#allocation4], %s131
      %s133 = sshll.u32 [#allocation8], 4
      %s134 = int_to_ptr.vmem [resolvable:$true] %s133
      %139 = dma.vmem_to_hbm [thread:$0]  %s134, 256, %s3, [#allocation4], 128, 128, 8
    $region29: #{model_forward.9} parent=1 // pred_fallthru
      _
    // Predicated region
    $region30: #{model_forward.9} parent=1 // pred_check
      _
    $region31: #{model_forward.9} parent=1 // pred_check_branch
      %141 = sbr.rel (0) target = $region33
    $region32: #{model_forward.9} parent=1 // pred_region
      %142 = dma.done [#allocation4], 256
    $region33: #{model_forward.9} parent=1 // pred_fallthru
      _
    %143 = vsyncpa [#allocation3], 1
    %144 = vsyncpa [#allocation6], 1
    %145 = vsyncpa [#allocation4], 1

// kernel: model_forward.13
$region0: #{model_forward.13}
  #allocation0 [shape = 'u32[]', space=smem, size = 0x4, offset = 0x4, fixed_abs, tag = 'smem constant byte address 0x4 - core index']
  #allocation1 [shape = 'u32[144,128]{1,0:T(1,128)}', space=vmem, size = 0x12000, scoped, tag = 'internal scratch']
  #allocation2 [shape = 'f32[1,1]{1,0:T(1,128)S(1)}', space=vmem, size = 0x200, scoped, tag = 'scoped memory for model_forward.13']
  %s0 = inlined_call_operand.hbm [shape: bf16[2,64,32], index: 0, kind: input, shape index: {}]
  %s1 = inlined_call_operand.hbm [shape: f32[2,1,64], index: 1, kind: input, shape index: {}]
  %s2 = inlined_call_operand.hbm [shape: bf16[32,32], index: 2, kind: input, shape index: {}]
  %s3 = inlined_call_operand.hbm [shape: f32[1,32], index: 3, kind: input, shape index: {}]
  %s4 = inlined_call_operand.hbm [shape: bf16[1,32], index: 4, kind: input, shape index: {}]
  %s5 = inlined_call_operand.<no memory space> [shape: f32[1,1], index: 5, kind: input, shape index: {}]
  %s6 = inlined_call_operand.hbm [shape: f32[2,1,64], index: 6, kind: output, shape index: {}]
  %s7 = sld [smem:[#allocation0]]
  $region77: #{model_forward.13} parent=0
    _
  %s9 = ssub.s32 1, %s7
  %s10 = scalar_select 0, %s9, %s7
  %v11 = vstv %s5
  %12 = vst [vmem:[#allocation2] sm:$0x1] %v11
  $region1: #{model_forward.13} parent=0
    #allocation3 [shape = 'u8[32768]{0}', space=vmem, size = 0x8000, scoped, tag = 'input window, operand 0']
    #allocation4 [shape = 's32[2]{0}', space=sflag, size = 0x8, scoped, tag = 'scoped memory for model_forward.13']
    #allocation5 [shape = 's32[2]{0}', space=sflag, size = 0x8, scoped, tag = 'scoped memory for model_forward.13']
    #allocation6 [shape = 'u8[1024]{0}', space=vmem, size = 0x400, scoped, tag = 'input window, operand 1']
    #allocation7 [shape = 's32[2]{0}', space=sflag, size = 0x8, scoped, tag = 'scoped memory for model_forward.13']
    #allocation8 [shape = 'u8[8192]{0}', space=vmem, size = 0x2000, scoped, tag = 'input window, operand 2, single buffered']
    #allocation9 [shape = 'u8[512]{0}', space=vmem, size = 0x400, scoped, tag = 'input window, operand 3, single buffered']
    #allocation10 [shape = 's32[1]{0}', space=sflag, size = 0x4, scoped, tag = 'scoped memory for model_forward.13']
    #allocation11 [shape = 'u8[512]{0}', space=vmem, size = 0x400, scoped, tag = 'input window, operand 4, single buffered']
    #allocation12 [shape = 'u8[1024]{0}', space=vmem, size = 0x400, scoped, tag = 'output window, operand 0']
    %13 = vsyncpa [#allocation4], 0
    %s14 = scalar_lea.sflag [#allocation4], 1
    %15 = vsyncpa %s14, 0
    %16 = vsyncpa [#allocation7], 0
    %s17 = scalar_lea.sflag [#allocation7], 1
    %18 = vsyncpa %s17, 0
    %19 = vsyncpa [#allocation10], 0
    %20 = vsyncpa [#allocation5], 0
    %s21 = scalar_lea.sflag [#allocation5], 1
    %22 = vsyncpa %s21, 0
    loop: start=0, step=1, limit=4
    $region2: #{model_forward.13} parent=1 // loop_pre_header
      _
    $region3: #{model_forward.13} parent=1 // loop_header
      %s24 = sphi 0, %s28
      %p25 = scmp.ge.s32.totalorder %s24, 4
      %s34 = sphi 0, %s36
      %s37 = sphi 0, %s34
      %s38 = sphi 0, %s37
      %s54 = sphi 0, %s38
      %s60 = sphi 0, %s62
      %s63 = sphi 0, %s60
      %s64 = sphi 0, %s63
      %s80 = sphi 0, %s64
      %s84 = sphi 0, %s84
      %s86 = sphi 0, %s84
      %s87 = sphi 0, %s86
      %s101 = sphi 0, %s87
      %s105 = sphi 0, %s105
      %s107 = sphi 0, %s105
      %s108 = sphi 0, %s107
      %s122 = sphi 0, %s108
      %s126 = sphi 0, %s126
      %s128 = sphi 0, %s126
      %s129 = sphi 0, %s128
      %s143 = sphi 0, %s129
      %s147 = sphi 0, %s147
      %s149 = sphi 0, %s147
      %s150 = sphi 0, %s149
      %s164 = sphi 0, %s150
      %s170 = sphi 0, %s172
      %s173 = sphi 0, %s170
      %s174 = sphi 0, %s173
      %s190 = sphi 0, %s174
    $region4: #{model_forward.13} parent=1 // loop_header_branch
      %27 = sbr.rel (%p25) target = $region8
    $region5: #{model_forward.13} parent=1 // loop_body
      %s29 = ssub.s32 %s24, 1
      %s30 = ssub.s32 %s24, 2
      %s31 = sadd.s32 %s24, 1
      %s32 = ssub.s32 %s24, %s31
      %p33 = scmp.eq.s32.totalorder %s32, 0
      %s35 = sadd.s32 %s34, 1
      %s36 = scalar_select %p33, %s34, %s35
      %p39 = pneg %p33
      %p40 = scmp.eq.s32.totalorder %s24, 1
      %p41 = por %p39, %p40
      %p42 = scmp.ne.s32.totalorder %s34, %s37
      %p43 = scmp.eq.s32.totalorder %s24, 0
      %p44 = por %p42, %p43
      %p45 = scmp.ne.s32.totalorder %s34, %s37
      %p46 = scmp.eq.s32.totalorder %s29, 1
      %p47 = por %p45, %p46
      %p48 = scmp.ne.s32.totalorder %s37, %s38
      %p49 = scmp.eq.s32.totalorder %s29, 0
      %p50 = por %p48, %p49
      %p51 = scmp.ne.s32.totalorder %s37, %s38
      %p52 = scmp.eq.s32.totalorder %s30, 1
      %p53 = por %p51, %p52
      %p55 = scmp.ne.s32.totalorder %s38, %s54
      %p56 = scmp.eq.s32.totalorder %s30, 0
      %p57 = por %p55, %p56
      %s58 = ssub.s32 %s24, %s31
      %p59 = scmp.eq.s32.totalorder %s58, 0
      %s61 = sadd.s32 %s60, 1
      %s62 = scalar_select %p59, %s60, %s61
      %p65 = pneg %p59
      %p66 = scmp.eq.s32.totalorder %s24, 1
      %p67 = por %p65, %p66
      %p68 = scmp.ne.s32.totalorder %s60, %s63
      %p69 = scmp.eq.s32.totalorder %s24, 0
      %p70 = por %p68, %p69
      %p71 = scmp.ne.s32.totalorder %s60, %s63
      %p72 = scmp.eq.s32.totalorder %s29, 1
      %p73 = por %p71, %p72
      %p74 = scmp.ne.s32.totalorder %s63, %s64
      %p75 = scmp.eq.s32.totalorder %s29, 0
      %p76 = por %p74, %p75
      %p77 = scmp.ne.s32.totalorder %s63, %s64
      %p78 = scmp.eq.s32.totalorder %s30, 1
      %p79 = por %p77, %p78
      %p81 = scmp.ne.s32.totalorder %s64, %s80
      %p82 = scmp.eq.s32.totalorder %s30, 0
      %p83 = por %p81, %p82
      %s85 = sadd.s32 %s84, 1
      %p88 = scmp.eq.s32.totalorder %s24, 1
      %p89 = scmp.ne.s32.totalorder %s84, %s86
      %p90 = scmp.eq.s32.totalorder %s24, 0
      %p91 = por %p89, %p90
      %p92 = scmp.ne.s32.totalorder %s84, %s86
      %p93 = scmp.eq.s32.totalorder %s29, 1
      %p94 = por %p92, %p93
      %p95 = scmp.ne.s32.totalorder %s86, %s87
      %p96 = scmp.eq.s32.totalorder %s29, 0
      %p97 = por %p95, %p96
      %p98 = scmp.ne.s32.totalorder %s86, %s87
      %p99 = scmp.eq.s32.totalorder %s30, 1
      %p100 = por %p98, %p99
      %p102 = scmp.ne.s32.totalorder %s87, %s101
      %p103 = scmp.eq.s32.totalorder %s30, 0
      %p104 = por %p102, %p103
      %s106 = sadd.s32 %s105, 1
      %p109 = scmp.eq.s32.totalorder %s24, 1
      %p110 = scmp.ne.s32.totalorder %s105, %s107
      %p111 = scmp.eq.s32.totalorder %s24, 0
      %p112 = por %p110, %p111
      %p113 = scmp.ne.s32.totalorder %s105, %s107
      %p114 = scmp.eq.s32.totalorder %s29, 1
      %p115 = por %p113, %p114
      %p116 = scmp.ne.s32.totalorder %s107, %s108
      %p117 = scmp.eq.s32.totalorder %s29, 0
      %p118 = por %p116, %p117
      %p119 = scmp.ne.s32.totalorder %s107, %s108
      %p120 = scmp.eq.s32.totalorder %s30, 1
      %p121 = por %p119, %p120
      %p123 = scmp.ne.s32.totalorder %s108, %s122
      %p124 = scmp.eq.s32.totalorder %s30, 0
      %p125 = por %p123, %p124
      %s127 = sadd.s32 %s126, 1
      %p130 = scmp.eq.s32.totalorder %s24, 1
      %p131 = scmp.ne.s32.totalorder %s126, %s128
      %p132 = scmp.eq.s32.totalorder %s24, 0
      %p133 = por %p131, %p132
      %p134 = scmp.ne.s32.totalorder %s126, %s128
      %p135 = scmp.eq.s32.totalorder %s29, 1
      %p136 = por %p134, %p135
      %p137 = scmp.ne.s32.totalorder %s128, %s129
      %p138 = scmp.eq.s32.totalorder %s29, 0
      %p139 = por %p137, %p138
      %p140 = scmp.ne.s32.totalorder %s128, %s129
      %p141 = scmp.eq.s32.totalorder %s30, 1
      %p142 = por %p140, %p141
      %p144 = scmp.ne.s32.totalorder %s129, %s143
      %p145 = scmp.eq.s32.totalorder %s30, 0
      %p146 = por %p144, %p145
      %s148 = sadd.s32 %s147, 1
      %p151 = scmp.eq.s32.totalorder %s24, 1
      %p152 = scmp.ne.s32.totalorder %s147, %s149
      %p153 = scmp.eq.s32.totalorder %s24, 0
      %p154 = por %p152, %p153
      %p155 = scmp.ne.s32.totalorder %s147, %s149
      %p156 = scmp.eq.s32.totalorder %s29, 1
      %p157 = por %p155, %p156
      %p158 = scmp.ne.s32.totalorder %s149, %s150
      %p159 = scmp.eq.s32.totalorder %s29, 0
      %p160 = por %p158, %p159
      %p161 = scmp.ne.s32.totalorder %s149, %s150
      %p162 = scmp.eq.s32.totalorder %s30, 1
      %p163 = por %p161, %p162
      %p165 = scmp.ne.s32.totalorder %s150, %s164
      %p166 = scmp.eq.s32.totalorder %s30, 0
      %p167 = por %p165, %p166
      %s168 = ssub.s32 %s24, %s31
      %p169 = scmp.eq.s32.totalorder %s168, 0
      %s171 = sadd.s32 %s170, 1
      %s172 = scalar_select %p169, %s170, %s171
      %p175 = pneg %p169
      %p176 = scmp.eq.s32.totalorder %s24, 1
      %p177 = por %p175, %p176
      %p178 = scmp.ne.s32.totalorder %s170, %s173
      %p179 = scmp.eq.s32.totalorder %s24, 0
      %p180 = por %p178, %p179
      %p181 = scmp.ne.s32.totalorder %s170, %s173
      %p182 = scmp.eq.s32.totalorder %s29, 1
      %p183 = por %p181, %p182
      %p184 = scmp.ne.s32.totalorder %s173, %s174
      %p185 = scmp.eq.s32.totalorder %s29, 0
      %p186 = por %p184, %p185
      %p187 = scmp.ne.s32.totalorder %s173, %s174
      %p188 = scmp.eq.s32.totalorder %s30, 1
      %p189 = por %p187, %p188
      %p191 = scmp.ne.s32.totalorder %s174, %s190
      %p192 = scmp.eq.s32.totalorder %s30, 0
      %p193 = por %p191, %p192
      %p194 = scmp.le.s32.totalorder 1, %s24
      %p195 = scmp.lt.s32.totalorder %s24, 3
      %p196 = pnand %p194, %p195
      %p197 = pneg %p196
      // Predicated region
      $region9: #{model_forward.13} parent=5 // pred_check
        _
      $region10: #{model_forward.13} parent=5 // pred_check_branch
        %199 = sbr.rel (%p196) target = $region12
      $region11: #{model_forward.13} parent=5 // pred_region
        %s200 = ssub.s32 %s24, 1
        // Predicated region
        $region13: #{model_forward.13} parent=11 // pred_check
          %p201 = pneg %p97
        $region14: #{model_forward.13} parent=11 // pred_check_branch
          %203 = sbr.rel (%p201) target = $region16
        $region15: #{model_forward.13} parent=11 // pred_region
          %s205 = ssub.s32 256, 256
          %206 = vsyncadd [#allocation7], %s205
          %s207 = sshll.u32 [#allocation8], 4
          %s208 = int_to_ptr.vmem [resolvable:$true] %s207
          %213 = dma.hbm_to_vmem [thread:$0]  %s2, 256, %s208, [#allocation7], 64, 64, 4
        $region16: #{model_forward.13} parent=11 // pred_fallthru
          _
        // Predicated region
        $region17: #{model_forward.13} parent=11 // pred_check
          %p214 = pneg %p118
        $region18: #{model_forward.13} parent=11 // pred_check_branch
          %216 = sbr.rel (%p214) target = $region20
        $region19: #{model_forward.13} parent=11 // pred_region
          %s218 = ssub.s32 16, 16
          %219 = vsyncadd [#allocation10], %s218
          %s221 = sshll.u32 [#allocation9], 4
          %s222 = int_to_ptr.vmem [resolvable:$true] %s221
          %224 = dma.hbm_to_vmem [thread:$0]  %s3, 16, %s222, [#allocation10]
        $region20: #{model_forward.13} parent=11 // pred_fallthru
          _
        // Predicated region
        $region21: #{model_forward.13} parent=11 // pred_check
          %p225 = pneg %p139
        $region22: #{model_forward.13} parent=11 // pred_check_branch
          %227 = sbr.rel (%p225) target = $region24
        $region23: #{model_forward.13} parent=11 // pred_region
          %s229 = ssub.s32 16, 16
          %230 = vsyncadd [#allocation10], %s229
          %s232 = sshll.u32 [#allocation11], 4
          %s233 = int_to_ptr.vmem [resolvable:$true] %s232
          %235 = dma.hbm_to_vmem [thread:$0]  %s4, 16, %s233, [#allocation10]
        $region24: #{model_forward.13} parent=11 // pred_fallthru
          _
        // Predicated region
        $region25: #{model_forward.13} parent=11 // pred_check
          %p236 = pneg %p160
        $region26: #{model_forward.13} parent=11 // pred_check_branch
          %238 = sbr.rel (%p236) target = $region28
        $region27: #{model_forward.13} parent=11 // pred_region
          _
        $region28: #{model_forward.13} parent=11 // pred_fallthru
          _
      $region12: #{model_forward.13} parent=5 // pred_fallthru
        _
      %p239 = scmp.lt.s32.totalorder %s24, 2
      // Predicated region
      $region29: #{model_forward.13} parent=5 // pred_check
        %p240 = pneg %p239
      $region30: #{model_forward.13} parent=5 // pred_check_branch
        %242 = sbr.rel (%p240) target = $region32
      $region31: #{model_forward.13} parent=5 // pred_region
        // Predicated region
        $region33: #{model_forward.13} parent=31 // pred_check
          %p243 = pneg %p44
        $region34: #{model_forward.13} parent=31 // pred_check_branch
          %245 = sbr.rel (%p243) target = $region36
        $region35: #{model_forward.13} parent=31 // pred_region
          %s246 = sand.u32 %s34, 1
          %s247 = scalar_lea.sflag [#allocation4], %s246
          %s248 = sand.u32 %s34, 1
          %s249 = smul.addr %s248, 32
          %s250 = scalar_lea.vmem [#allocation3], %s249
          %s252 = ssub.s32 512, 512
          %253 = vsyncadd %s247, %s252
          %s254 = smul.addr %s24, 8
          %s255 = smul.addr %s254, 64
          %s256 = scalar_lea.hbm %s0, %s255
          %s257 = sshll.u32 %s250, 4
          %s258 = int_to_ptr.vmem [resolvable:$true] %s257
          %263 = dma.hbm_to_vmem [thread:$0]  %s256, 512, %s258, %s247, 64, 64, 4
        $region36: #{model_forward.13} parent=31 // pred_fallthru
          _
        // Predicated region
        $region37: #{model_forward.13} parent=31 // pred_check
          %p264 = pneg %p70
        $region38: #{model_forward.13} parent=31 // pred_check_branch
          %266 = sbr.rel (%p264) target = $region40
        $region39: #{model_forward.13} parent=31 // pred_region
          %s267 = sand.u32 %s24, 1
          %s268 = scalar_lea.sflag [#allocation7], %s267
          %s269 = sand.u32 %s60, 1
          %s270 = scalar_lea.vmem [#allocation6], %s269
          %s272 = ssub.s32 16, 16
          %273 = vsyncadd %s268, %s272
          %s274 = smul.addr %s24, 16
          %s275 = scalar_lea.hbm %s1, %s274
          %s277 = sshll.u32 %s270, 4
          %s278 = int_to_ptr.vmem [resolvable:$true] %s277
          %280 = dma.hbm_to_vmem [thread:$0]  %s275, 16, %s278, %s268
        $region40: #{model_forward.13} parent=31 // pred_fallthru
          _
      $region32: #{model_forward.13} parent=5 // pred_fallthru
        _
      %p281 = scmp.le.s32.totalorder 1, %s24
      %p282 = scmp.lt.s32.totalorder %s24, 3
      %p283 = pnand %p281, %p282
      %p284 = pneg %p283
      // Predicated region
      $region41: #{model_forward.13} parent=5 // pred_check
        _
      $region42: #{model_forward.13} parent=5 // pred_check_branch
        %286 = sbr.rel (%p283) target = $region44
      $region43: #{model_forward.13} parent=5 // pred_region
        %s287 = ssub.s32 %s24, 1
        %s288 = sand.u32 %s37, 1
        %s289 = scalar_lea.sflag [#allocation4], %s288
        %s290 = sand.u32 %s37, 1
        %s291 = smul.addr %s290, 32
        %s292 = scalar_lea.vmem [#allocation3], %s291
        // Predicated region
        $region45: #{model_forward.13} parent=43 // pred_check
          %p293 = pneg %p50
        $region46: #{model_forward.13} parent=43 // pred_check_branch
          %295 = sbr.rel (%p293) target = $region48
        $region47: #{model_forward.13} parent=43 // pred_region
          %296 = dma.done %s289, 512
        $region48: #{model_forward.13} parent=43 // pred_fallthru
          _
        %s297 = sand.u32 %s29, 1
        %s298 = scalar_lea.sflag [#allocation7], %s297
        %s299 = sand.u32 %s63, 1
        %s300 = scalar_lea.vmem [#allocation6], %s299
        // Predicated region
        $region49: #{model_forward.13} parent=43 // pred_check
          %p301 = pneg %p76
        $region50: #{model_forward.13} parent=43 // pred_check_branch
          %303 = sbr.rel (%p301) target = $region52
        $region51: #{model_forward.13} parent=43 // pred_region
          %304 = dma.done %s298, 16
        $region52: #{model_forward.13} parent=43 // pred_fallthru
          _
        // Predicated region
        $region53: #{model_forward.13} parent=43 // pred_check
          %p305 = pneg %p97
        $region54: #{model_forward.13} parent=43 // pred_check_branch
          %307 = sbr.rel (%p305) target = $region56
        $region55: #{model_forward.13} parent=43 // pred_region
          %308 = dma.done [#allocation7], 256
        $region56: #{model_forward.13} parent=43 // pred_fallthru
          _
        // Predicated region
        $region57: #{model_forward.13} parent=43 // pred_check
          %p309 = pneg %p118
        $region58: #{model_forward.13} parent=43 // pred_check_branch
          %311 = sbr.rel (%p309) target = $region60
        $region59: #{model_forward.13} parent=43 // pred_region
          %312 = dma.done [#allocation10], 16
        $region60: #{model_forward.13} parent=43 // pred_fallthru
          _
        // Predicated region
        $region61: #{model_forward.13} parent=43 // pred_check
          %p313 = pneg %p139
        $region62: #{model_forward.13} parent=43 // pred_check_branch
          %315 = sbr.rel (%p313) target = $region64
        $region63: #{model_forward.13} parent=43 // pred_region
          %316 = dma.done [#allocation10], 16
        $region64: #{model_forward.13} parent=43 // pred_fallthru
          _
        %s317 = sand.u32 %s37, 1
        %s318 = scalar_lea.sflag [#allocation4], %s317
        %s319 = sand.u32 %s37, 1
        %s320 = smul.addr %s319, 32
        %s321 = scalar_lea.vmem [#allocation3], %s320
        %p322 = pneg %p50
        %p323 = pneg %p47
        %s324 = sand.u32 %s29, 1
        %s325 = scalar_lea.sflag [#allocation7], %s324
        %s326 = sand.u32 %s63, 1
        %s327 = scalar_lea.vmem [#allocation6], %s326
        %p328 = pneg %p76
        %p329 = pneg %p73
        %p330 = pneg %p97
        %p331 = pneg %p94
        %p332 = pneg %p118
        %p333 = pneg %p115
        %p334 = pneg %p139
        %p335 = pneg %p136
        %p336 = pneg %p160
        %p337 = pneg %p157
        %p338 = pneg %p186
        %p339 = pneg %p183
        %s340 = sand.u32 %s173, 1
        %s341 = scalar_lea.sflag [#allocation5], %s340
        %s342 = sand.u32 %s173, 1
        %s343 = scalar_lea.vmem [#allocation12], %s342
        %v345 = vld [vmem:[%s292] sm:$0xf]
        %v346 = vld [vmem:[%s292 + $0x4] sm:$0xf]
        %v347 = vld [vmem:[%s292 + $0x8] sm:$0xf]
        %v348 = vld [vmem:[%s292 + $0xc] sm:$0xf]
        %v349 = vld [vmem:[%s292 + $0x10] sm:$0xf]
        %v350 = vld [vmem:[%s292 + $0x14] sm:$0xf]
        %v351 = vld [vmem:[%s292 + $0x18] sm:$0xf]
        %v352 = vld [vmem:[%s292 + $0x1c] sm:$0xf]
        %v353 = vld [vmem:[#allocation8] sm:$0xf]
        %v354 = vld [vmem:[#allocation8 + $0x4] sm:$0xf]
        %v355 = vld [vmem:[#allocation8 + $0x8] sm:$0xf]
        %v356 = vld [vmem:[#allocation8 + $0xc] sm:$0xf]
        %v357 = vld [vmem:[#allocation9] sm:$0x1]
        %v359 = vlaneseq
        %v360 = vshrl.u32 %v359, 7
        %v361 = vsub.s32 0, %v360
        %v362 = vrot.slane %v357, %v361
        %v372 = vunpack.c.l.b16 %v345
        %v373 = vunpack.c.l.b16 %v346
        %v374 = vunpack.c.l.b16 %v347
        %v375 = vunpack.c.l.b16 %v348
        %v376 = vunpack.c.l.b16 %v349
        %v377 = vunpack.c.l.b16 %v350
        %v378 = vunpack.c.l.b16 %v351
        %v379 = vunpack.c.l.b16 %v352
        %v380 = vpack.c.b16 %v373, %v372
        %v381 = vpack.c.b16 %v375, %v374
        %v382 = vpack.c.b16 %v377, %v376
        %v383 = vpack.c.b16 %v379, %v378
        %v388 = vunpack.c.l.b16 %v353
        %v389 = vunpack.c.l.b16 %v354
        %v390 = vunpack.c.l.b16 %v355
        %v391 = vunpack.c.l.b16 %v356
        %v392 = vpack.c.b16 %v389, %v388
        %v393 = vpack.c.b16 %v391, %v390
        %vm396 = vcmask 261120
        %v398 = vsel %vm396, %v380, 0
        %v401 = vsel %vm396, %v381, 0
        %v404 = vsel %vm396, %v382, 0
        %v407 = vsel %vm396, %v383, 0
        %409 = vmatprep.subr.bf16.mxu0 0
        %410 = vmatpush1.bf16.msra.mxu0 %v392
        %411 = vmatprep.subr.bf16.mxu0 0
        %412 = vmatpush1.bf16.msra.mxu0 %v393
        %413 = vmatprep.subr.bf16.mxu0 0
        %414 = vmatpush1.bf16.msra.mxu0 0
        %415 = vmatprep.subr.bf16.mxu0 0
        %416 = vmatpush1.bf16.msra.mxu0 0
        %417 = vmatprep.subr.bf16.mxu0 0
        %418 = vmatpush1.bf16.msra.mxu0 0
        %419 = vmatprep.subr.bf16.mxu0 0
        %420 = vmatpush1.bf16.msra.mxu0 0
        %421 = vmatprep.subr.bf16.mxu0 0
        %422 = vmatpush1.bf16.msra.mxu0 0
        %423 = vmatprep.subr.bf16.mxu0 0
        %424 = vmatpush1.bf16.msra.mxu0 0
        %425 = vmatprep.subr.bf16.mxu0 0
        %426 = vmatpush1.bf16.msra.mxu0 0
        %427 = vmatprep.subr.bf16.mxu0 0
        %428 = vmatpush1.bf16.msra.mxu0 0
        %429 = vmatprep.subr.bf16.mxu0 0
        %430 = vmatpush1.bf16.msra.mxu0 0
        %431 = vmatprep.subr.bf16.mxu0 0
        %432 = vmatpush1.bf16.msra.mxu0 0
        %433 = vmatprep.subr.bf16.mxu0 0
        %434 = vmatpush1.bf16.msra.mxu0 0
        %435 = vmatprep.subr.bf16.mxu0 0
        %436 = vmatpush1.bf16.msra.mxu0 0
        %437 = vmatprep.subr.bf16.mxu0 0
        %438 = vmatpush1.bf16.msra.mxu0 0
        %439 = vmatprep.subr.bf16.mxu0 0
        %440 = vmatpush1.bf16.msra.mxu0 0
        %441 = vmatprep.mubr.bf16.mxu0 0
        %442 = vmatmul.mubr.bf16.gmra.mrb[0].mxu0 %v398
        %v443 = vpop.f32.mrb[0].mxu0
        %v444 = vadd.f32 %v362, %v443
        %v445 = vpop.f32.mrb[0].mxu0
        %v446 = vpop.f32.mrb[0].mxu0
        %v447 = vadd.f32 %v362, %v446
        %v448 = vpop.f32.mrb[0].mxu0
        %449 = vmatprep.mubr.bf16.mxu0 0
        %450 = vmatmul.mubr.bf16.gmra.mrb[0].mxu0 %v401
        %v451 = vpop.f32.mrb[0].mxu0
        %v452 = vadd.f32 %v362, %v451
        %v453 = vpop.f32.mrb[0].mxu0
        %v454 = vpop.f32.mrb[0].mxu0
        %v455 = vadd.f32 %v362, %v454
        %v456 = vpop.f32.mrb[0].mxu0
        %457 = vmatprep.mubr.bf16.mxu0 0
        %458 = vmatmul.mubr.bf16.gmra.mrb[0].mxu0 %v404
        %v459 = vpop.f32.mrb[0].mxu0
        %v460 = vadd.f32 %v362, %v459
        %v461 = vpop.f32.mrb[0].mxu0
        %v462 = vpop.f32.mrb[0].mxu0
        %v463 = vadd.f32 %v362, %v462
        %v464 = vpop.f32.mrb[0].mxu0
        %465 = vmatprep.mubr.bf16.mxu0 0
        %466 = vmatmul.mubr.bf16.gmra.mrb[0].mxu0 %v407
        %v467 = vpop.f32.mrb[0].mxu0
        %v468 = vadd.f32 %v362, %v467
        %v469 = vpop.f32.mrb[0].mxu0
        %v470 = vpop.f32.mrb[0].mxu0
        %v471 = vadd.f32 %v362, %v470
        %v472 = vpop.f32.mrb[0].mxu0
        %473 = vdwg.mxu0
        %v474 = vmax.f32 %v444, 0.0
        %v475 = vmax.f32 %v447, 0.0
        %v476 = vmax.f32 %v452, 0.0
        %v477 = vmax.f32 %v455, 0.0
        %v478 = vmax.f32 %v460, 0.0
        %v479 = vmax.f32 %v463, 0.0
        %v480 = vmax.f32 %v468, 0.0
        %v481 = vmax.f32 %v471, 0.0
        %v482 = vld [vmem:[#allocation11] sm:$0x1]
        %v483 = vpack.c.bf16 %v475, %v474
        %v484 = vpack.c.bf16 %v477, %v476
        %v485 = vpack.c.bf16 %v479, %v478
        %v486 = vpack.c.bf16 %v481, %v480
        %v487 = vld [vmem:[#allocation2] sm:$0x1]
        %489 = vset.pattern.permute.xlu0 0
        %490 = vperm.xlu0 %489, %v487
        %v491 = vpop.permute.xlu0 %490
        %v493 = vlaneseq
        %v494 = vshrl.u32 %v493, 7
        %v495 = vsub.s32 0, %v494
        %v496 = vrot.slane %v491, %v495
        %v498 = vsel %vm396, %v482, 0
        %v501 = vsel %vm396, %v483, 0
        %v504 = vsel %vm396, %v484, 0
        %v507 = vsel %vm396, %v485, 0
        %v510 = vsel %vm396, %v486, 0
        %512 = vmatprep.subr.bf16.mxu0 0
        %513 = vmatpush1.bf16.xpose.msra.mxu0 %v501
        %514 = vmatprep.subr.bf16.mxu0 0
        %515 = vmatpush1.bf16.xpose.msra.mxu0 %v504
        %516 = vmatprep.subr.bf16.mxu0 0
        %517 = vmatpush1.bf16.xpose.msra.mxu0 %v507
        %518 = vmatprep.subr.bf16.mxu0 0
        %519 = vmatpush1.bf16.xpose.msra.mxu0 %v510
        %520 = vmatprep.subr.bf16.mxu0 0
        %521 = vmatpush1.bf16.xpose.msra.mxu0 0
        %522 = vmatprep.subr.bf16.mxu0 0
        %523 = vmatpush1.bf16.xpose.msra.mxu0 0
        %524 = vmatprep.subr.bf16.mxu0 0
        %525 = vmatpush1.bf16.xpose.msra.mxu0 0
        %526 = vmatprep.subr.bf16.mxu0 0
        %527 = vmatpush1.bf16.xpose.msra.mxu0 0
        %528 = vmatprep.subr.bf16.mxu0 0
        %529 = vmatpush1.bf16.xpose.msra.mxu0 0
        %530 = vmatprep.subr.bf16.mxu0 0
        %531 = vmatpush1.bf16.xpose.msra.mxu0 0
        %532 = vmatprep.subr.bf16.mxu0 0
        %533 = vmatpush1.bf16.xpose.msra.mxu0 0
        %534 = vmatprep.subr.bf16.mxu0 0
        %535 = vmatpush1.bf16.xpose.msra.mxu0 0
        %536 = vmatprep.subr.bf16.mxu0 0
        %537 = vmatpush1.bf16.xpose.msra.mxu0 0
        %538 = vmatprep.subr.bf16.mxu0 0
        %539 = vmatpush1.bf16.xpose.msra.mxu0 0
        %540 = vmatprep.subr.bf16.mxu0 0
        %541 = vmatpush1.bf16.xpose.msra.mxu0 0
        %542 = vmatprep.subr.bf16.mxu0 0
        %543 = vmatpush1.bf16.xpose.msra.mxu0 0
        %544 = vmatprep.mubr.bf16.mxu0 0
        %545 = vmatmul.mubr.bf16.gmra.mrb[0].mxu0 %v498
        %v546 = vpop.f32.mrb[0].mxu0
        %v547 = vadd.f32 %v496, %v546
        %v548 = vpop.f32.mrb[0].mxu0
        %v549 = vpop.f32.mrb[0].mxu0
        %v550 = vpop.f32.mrb[0].mxu0
        %551 = vdwg.mxu0
        %v552 = vld [vmem:[%s300] sm:$0x1]
        %vm553 = vcmp.gt.f32.partialorder %v552, 0.5
        %v554 = vsel %vm553, -1e+30, %v547
        %vm555 = vcmask 516096
        %v556 = vsel %vm555, %v554, -inf
        %557 = vmax.xlane.f32.xlu0 %v556
        %v558 = vpop.xlane.xlu0 %557
        %v559 = vsub.f32 %v554, %v558
        %v560 = vmul.f32 %v559, 1.442695
        %v561 = vpow.pop %v560
        %v562 = vsel %vm555, %v561, 0.0
        %563 = vadd.xlane.f32.xlu0 %v562
        %v564 = vpop.xlane.xlu0 %563
        %v565 = vlog2.pop %v564
        %v566 = vmul.f32 %v565, 0.6931472
        %v567 = vadd.f32 %v566, %v558
        %v568 = vsub.f32 %v554, %v567
        %569 = vst.msk [vmem:[%s343] sm:$0x1] %vm555, %v568
        %s570 = sand.u32 %s173, 1
        %s571 = scalar_lea.sflag [#allocation5], %s570
        %s572 = sand.u32 %s173, 1
        %s573 = scalar_lea.vmem [#allocation12], %s572
        // Predicated region
        $region65: #{model_forward.13} parent=43 // pred_check
          %p574 = pneg %p183
        $region66: #{model_forward.13} parent=43 // pred_check_branch
          %576 = sbr.rel (%p574) target = $region68
        $region67: #{model_forward.13} parent=43 // pred_region
          %s578 = ssub.s32 16, 16
          %579 = vsyncadd %s571, %s578
          %s580 = smul.addr %s29, 16
          %s581 = scalar_lea.hbm %s6, %s580
          %s583 = sshll.u32 %s573, 4
          %s584 = int_to_ptr.vmem [resolvable:$true] %s583
          %586 = dma.vmem_to_hbm [thread:$0]  %s584, 16, %s581, %s571
        $region68: #{model_forward.13} parent=43 // pred_fallthru
          _
      $region44: #{model_forward.13} parent=5 // pred_fallthru
        _
      %p587 = scmp.le.s32.totalorder 2, %s24
      // Predicated region
      $region69: #{model_forward.13} parent=5 // pred_check
        %p588 = pneg %p587
      $region70: #{model_forward.13} parent=5 // pred_check_branch
        %590 = sbr.rel (%p588) target = $region72
      $region71: #{model_forward.13} parent=5 // pred_region
        %s591 = ssub.s32 %s24, 2
        // Predicated region
        $region73: #{model_forward.13} parent=71 // pred_check
          %p592 = pneg %p189
        $region74: #{model_forward.13} parent=71 // pred_check_branch
          %594 = sbr.rel (%p592) target = $region76
        $region75: #{model_forward.13} parent=71 // pred_region
          %s595 = sand.u32 %s174, 1
          %s596 = scalar_lea.sflag [#allocation5], %s595
          %s597 = sand.u32 %s174, 1
          %s598 = scalar_lea.vmem [#allocation12], %s597
          %599 = dma.done %s596, 16
        $region76: #{model_forward.13} parent=71 // pred_fallthru
          _
      $region72: #{model_forward.13} parent=5 // pred_fallthru
        _
    $region6: #{model_forward.13} parent=1 // loop_footer
      %s28 = sadd.s32 1, %s24
    $region7: #{model_forward.13} parent=1 // loop_footer_branch
      %23 = sbr.rel target = $region3
    $region8: #{model_forward.13} parent=1 // loop_exit
      _
    %600 = vsyncpa [#allocation4], 1
    %s601 = scalar_lea.sflag [#allocation4], 1
    %602 = vsyncpa %s601, 1
    %603 = vsyncpa [#allocation7], 1
    %s604 = scalar_lea.sflag [#allocation7], 1
    %605 = vsyncpa %s604, 1
    %606 = vsyncpa [#allocation10], 1
    %607 = vsyncpa [#allocation5], 1
    %s608 = scalar_lea.sflag [#allocation5], 1
    %609 = vsyncpa %s608, 1

// kernel: model_forward.10
$region0: #{model_forward.10}
  #allocation0 [shape = 'u32[]', space=smem, size = 0x4, offset = 0x4, fixed_abs, tag = 'smem constant byte address 0x4 - core index']
  #allocation1 [shape = 'u32[144,128]{1,0:T(1,128)}', space=vmem, size = 0x12000, scoped, tag = 'internal scratch']
  %s0 = inlined_call_operand.hbm [shape: bf16[2,8,8,32], index: 0, kind: input, shape index: {}, may-alias: {0,6}]
  %s1 = inlined_call_operand.hbm [shape: f32[2,8,128], index: 1, kind: input, shape index: {}]
  %s2 = inlined_call_operand.hbm [shape: f32[2,8,32], index: 2, kind: input, shape index: {}]
  %s3 = inlined_call_operand.hbm [shape: bf16[32,32], index: 3, kind: input, shape index: {}]
  %s4 = inlined_call_operand.hbm [shape: f32[1,32], index: 4, kind: input, shape index: {}]
  %s5 = inlined_call_operand.hbm [shape: f32[2,8,32], index: 5, kind: output, shape index: {0}]
  %s6 = inlined_call_operand.hbm [shape: bf16[2,8,8,32], index: 6, kind: output, shape index: {1}, may-alias: {0,6}]
  %7 = xla_tuple %s5, %s6
  %s8 = sld [smem:[#allocation0]]
  $region81: #{model_forward.10} parent=0
    _
  %s10 = ssub.s32 1, %s8
  %s11 = scalar_select 0, %s10, %s8
  $region1: #{model_forward.10} parent=0
    #allocation2 [shape = 'u8[32768]{0}', space=vmem, size = 0x8000, scoped, tag = 'input window, operand 0']
    #allocation3 [shape = 's32[2]{0}', space=sflag, size = 0x8, scoped, tag = 'scoped memory for model_forward.10']
    #allocation4 [shape = 's32[2]{0}', space=sflag, size = 0x8, scoped, tag = 'scoped memory for model_forward.10']
    #allocation5 [shape = 'u8[8192]{0}', space=vmem, size = 0x2000, scoped, tag = 'input window, operand 1']
    #allocation6 [shape = 's32[2]{0}', space=sflag, size = 0x8, scoped, tag = 'scoped memory for model_forward.10']
    #allocation7 [shape = 'u8[8192]{0}', space=vmem, size = 0x2000, scoped, tag = 'input window, operand 2']
    #allocation8 [shape = 'u8[8192]{0}', space=vmem, size = 0x2000, scoped, tag = 'input window, operand 3, single buffered']
    #allocation9 [shape = 's32[1]{0}', space=sflag, size = 0x4, scoped, tag = 'scoped memory for model_forward.10']
    #allocation10 [shape = 'u8[512]{0}', space=vmem, size = 0x400, scoped, tag = 'input window, operand 4, single buffered']
    #allocation11 [shape = 'u8[8192]{0}', space=vmem, size = 0x2000, scoped, tag = 'output window, operand 0']
    #allocation12 [shape = 'u8[32768]{0}', space=vmem, size = 0x8000, scoped, tag = 'output window, operand 1']
    #allocation13 [shape = 's32[2]{0}', space=sflag, size = 0x8, scoped, tag = 'scoped memory for model_forward.10']
    %12 = vsyncpa [#allocation3], 0
    %s13 = scalar_lea.sflag [#allocation3], 1
    %14 = vsyncpa %s13, 0
    %15 = vsyncpa [#allocation6], 0
    %s16 = scalar_lea.sflag [#allocation6], 1
    %17 = vsyncpa %s16, 0
    %18 = vsyncpa [#allocation9], 0
    %19 = vsyncpa [#allocation4], 0
    %s20 = scalar_lea.sflag [#allocation4], 1
    %21 = vsyncpa %s20, 0
    %22 = vsyncpa [#allocation13], 0
    %s23 = scalar_lea.sflag [#allocation13], 1
    %24 = vsyncpa %s23, 0
    loop: start=0, step=1, limit=4
    $region2: #{model_forward.10} parent=1 // loop_pre_header
      _
    $region3: #{model_forward.10} parent=1 // loop_header
      %s26 = sphi 0, %s30
      %p27 = scmp.ge.s32.totalorder %s26, 4
      %s33 = sphi 0, %s45
      %s34 = sphi 0, %s41
      %s35 = sphi 0, %s33
      %s36 = sphi 0, %s34
      %s37 = sphi 0, %s35
      %s38 = sphi 0, %s36
      %s50 = sphi 0, %s52
      %s53 = sphi 0, %s50
      %s54 = sphi 0, %s53
      %s70 = sphi 0, %s54
      %s76 = sphi 0, %s78
      %s79 = sphi 0, %s76
      %s80 = sphi 0, %s79
      %s96 = sphi 0, %s80
      %s104 = sphi 0, %s106
      %s107 = sphi 0, %s104
      %s108 = sphi 0, %s107
      %s124 = sphi 0, %s108
      %s128 = sphi 0, %s128
      %s130 = sphi 0, %s128
      %s131 = sphi 0, %s130
      %s145 = sphi 0, %s131
      %s149 = sphi 0, %s149
      %s151 = sphi 0, %s149
      %s152 = sphi 0, %s151
      %s166 = sphi 0, %s152
      %s174 = sphi 0, %s176
      %s177 = sphi 0, %s174
      %s178 = sphi 0, %s177
      %s194 = sphi 0, %s178
      %s202 = sphi 0, %s204
      %s205 = sphi 0, %s202
      %s206 = sphi 0, %s205
      %s222 = sphi 0, %s206
    $region4: #{model_forward.10} parent=1 // loop_header_branch
      %29 = sbr.rel (%p27) target = $region8
    $region5: #{model_forward.10} parent=1 // loop_body
      %s31 = ssub.s32 %s26, 1
      %s32 = ssub.s32 %s26, 2
      %s39 = sadd.s32 1, %s34
      %p40 = scmp.ge.s32.totalorder %s39, 1
      %s41 = scalar_select %p40, 0, %s39
      %s42 = sadd.s32 1, %s33
      %s43 = scalar_select %p40, %s42, %s33
      %p44 = scmp.ge.s32.totalorder %s43, 2
      %s45 = scalar_select %p44, 0, %s43
      %s46 = ssub.s32 %s33, %s45
      %s47 = ssub.s32 %s34, %s41
      %s48 = sor.u32 %s46, %s47
      %p49 = scmp.eq.s32.totalorder %s48, 0
      %s51 = sadd.s32 %s50, 1
      %s52 = scalar_select %p49, %s50, %s51
      %p55 = pneg %p49
      %p56 = scmp.eq.s32.totalorder %s26, 1
      %p57 = por %p55, %p56
      %p58 = scmp.ne.s32.totalorder %s50, %s53
      %p59 = scmp.eq.s32.totalorder %s26, 0
      %p60 = por %p58, %p59
      %p61 = scmp.ne.s32.totalorder %s50, %s53
      %p62 = scmp.eq.s32.totalorder %s31, 1
      %p63 = por %p61, %p62
      %p64 = scmp.ne.s32.totalorder %s53, %s54
      %p65 = scmp.eq.s32.totalorder %s31, 0
      %p66 = por %p64, %p65
      %p67 = scmp.ne.s32.totalorder %s53, %s54
      %p68 = scmp.eq.s32.totalorder %s32, 1
      %p69 = por %p67, %p68
      %p71 = scmp.ne.s32.totalorder %s54, %s70
      %p72 = scmp.eq.s32.totalorder %s32, 0
      %p73 = por %p71, %p72
      %s74 = ssub.s32 %s33, %s45
      %p75 = scmp.eq.s32.totalorder %s74, 0
      %s77 = sadd.s32 %s76, 1
      %s78 = scalar_select %p75, %s76, %s77
      %p81 = pneg %p75
      %p82 = scmp.eq.s32.totalorder %s26, 1
      %p83 = por %p81, %p82
      %p84 = scmp.ne.s32.totalorder %s76, %s79
      %p85 = scmp.eq.s32.totalorder %s26, 0
      %p86 = por %p84, %p85
      %p87 = scmp.ne.s32.totalorder %s76, %s79
      %p88 = scmp.eq.s32.totalorder %s31, 1
      %p89 = por %p87, %p88
      %p90 = scmp.ne.s32.totalorder %s79, %s80
      %p91 = scmp.eq.s32.totalorder %s31, 0
      %p92 = por %p90, %p91
      %p93 = scmp.ne.s32.totalorder %s79, %s80
      %p94 = scmp.eq.s32.totalorder %s32, 1
      %p95 = por %p93, %p94
      %p97 = scmp.ne.s32.totalorder %s80, %s96
      %p98 = scmp.eq.s32.totalorder %s32, 0
      %p99 = por %p97, %p98
      %s100 = ssub.s32 %s33, %s45
      %s101 = ssub.s32 %s34, %s41
      %s102 = sor.u32 %s100, %s101
      %p103 = scmp.eq.s32.totalorder %s102, 0
      %s105 = sadd.s32 %s104, 1
      %s106 = scalar_select %p103, %s104, %s105
      %p109 = pneg %p103
      %p110 = scmp.eq.s32.totalorder %s26, 1
      %p111 = por %p109, %p110
      %p112 = scmp.ne.s32.totalorder %s104, %s107
      %p113 = scmp.eq.s32.totalorder %s26, 0
      %p114 = por %p112, %p113
      %p115 = scmp.ne.s32.totalorder %s104, %s107
      %p116 = scmp.eq.s32.totalorder %s31, 1
      %p117 = por %p115, %p116
      %p118 = scmp.ne.s32.totalorder %s107, %s108
      %p119 = scmp.eq.s32.totalorder %s31, 0
      %p120 = por %p118, %p119
      %p121 = scmp.ne.s32.totalorder %s107, %s108
      %p122 = scmp.eq.s32.totalorder %s32, 1
      %p123 = por %p121, %p122
      %p125 = scmp.ne.s32.totalorder %s108, %s124
      %p126 = scmp.eq.s32.totalorder %s32, 0
      %p127 = por %p125, %p126
      %s129 = sadd.s32 %s128, 1
      %p132 = scmp.eq.s32.totalorder %s26, 1
      %p133 = scmp.ne.s32.totalorder %s128, %s130
      %p134 = scmp.eq.s32.totalorder %s26, 0
      %p135 = por %p133, %p134
      %p136 = scmp.ne.s32.totalorder %s128, %s130
      %p137 = scmp.eq.s32.totalorder %s31, 1
      %p138 = por %p136, %p137
      %p139 = scmp.ne.s32.totalorder %s130, %s131
      %p140 = scmp.eq.s32.totalorder %s31, 0
      %p141 = por %p139, %p140
      %p142 = scmp.ne.s32.totalorder %s130, %s131
      %p143 = scmp.eq.s32.totalorder %s32, 1
      %p144 = por %p142, %p143
      %p146 = scmp.ne.s32.totalorder %s131, %s145
      %p147 = scmp.eq.s32.totalorder %s32, 0
      %p148 = por %p146, %p147
      %s150 = sadd.s32 %s149, 1
      %p153 = scmp.eq.s32.totalorder %s26, 1
      %p154 = scmp.ne.s32.totalorder %s149, %s151
      %p155 = scmp.eq.s32.totalorder %s26, 0
      %p156 = por %p154, %p155
      %p157 = scmp.ne.s32.totalorder %s149, %s151
      %p158 = scmp.eq.s32.totalorder %s31, 1
      %p159 = por %p157, %p158
      %p160 = scmp.ne.s32.totalorder %s151, %s152
      %p161 = scmp.eq.s32.totalorder %s31, 0
      %p162 = por %p160, %p161
      %p163 = scmp.ne.s32.totalorder %s151, %s152
      %p164 = scmp.eq.s32.totalorder %s32, 1
      %p165 = por %p163, %p164
      %p167 = scmp.ne.s32.totalorder %s152, %s166
      %p168 = scmp.eq.s32.totalorder %s32, 0
      %p169 = por %p167, %p168
      %s170 = ssub.s32 %s33, %s45
      %s171 = ssub.s32 %s34, %s41
      %s172 = sor.u32 %s170, %s171
      %p173 = scmp.eq.s32.totalorder %s172, 0
      %s175 = sadd.s32 %s174, 1
      %s176 = scalar_select %p173, %s174, %s175
      %p179 = pneg %p173
      %p180 = scmp.eq.s32.totalorder %s26, 1
      %p181 = por %p179, %p180
      %p182 = scmp.ne.s32.totalorder %s174, %s177
      %p183 = scmp.eq.s32.totalorder %s26, 0
      %p184 = por %p182, %p183
      %p185 = scmp.ne.s32.totalorder %s174, %s177
      %p186 = scmp.eq.s32.totalorder %s31, 1
      %p187 = por %p185, %p186
      %p188 = scmp.ne.s32.totalorder %s177, %s178
      %p189 = scmp.eq.s32.totalorder %s31, 0
      %p190 = por %p188, %p189
      %p191 = scmp.ne.s32.totalorder %s177, %s178
      %p192 = scmp.eq.s32.totalorder %s32, 1
      %p193 = por %p191, %p192
      %p195 = scmp.ne.s32.totalorder %s178, %s194
      %p196 = scmp.eq.s32.totalorder %s32, 0
      %p197 = por %p195, %p196
      %s198 = ssub.s32 %s33, %s45
      %s199 = ssub.s32 %s34, %s41
      %s200 = sor.u32 %s198, %s199
      %p201 = scmp.eq.s32.totalorder %s200, 0
      %s203 = sadd.s32 %s202, 1
      %s204 = scalar_select %p201, %s202, %s203
      %p207 = pneg %p201
      %p208 = scmp.eq.s32.totalorder %s26, 1
      %p209 = por %p207, %p208
      %p210 = scmp.ne.s32.totalorder %s202, %s205
      %p211 = scmp.eq.s32.totalorder %s26, 0
      %p212 = por %p210, %p211
      %p213 = scmp.ne.s32.totalorder %s202, %s205
      %p214 = scmp.eq.s32.totalorder %s31, 1
      %p215 = por %p213, %p214
      %p216 = scmp.ne.s32.totalorder %s205, %s206
      %p217 = scmp.eq.s32.totalorder %s31, 0
      %p218 = por %p216, %p217
      %p219 = scmp.ne.s32.totalorder %s205, %s206
      %p220 = scmp.eq.s32.totalorder %s32, 1
      %p221 = por %p219, %p220
      %p223 = scmp.ne.s32.totalorder %s206, %s222
      %p224 = scmp.eq.s32.totalorder %s32, 0
      %p225 = por %p223, %p224
      %p226 = scmp.le.s32.totalorder 1, %s26
      %p227 = scmp.lt.s32.totalorder %s26, 3
      %p228 = pnand %p226, %p227
      %p229 = pneg %p228
      // Predicated region
      $region9: #{model_forward.10} parent=5 // pred_check
        _
      $region10: #{model_forward.10} parent=5 // pred_check_branch
        %231 = sbr.rel (%p228) target = $region12
      $region11: #{model_forward.10} parent=5 // pred_region
        %s232 = ssub.s32 %s26, 1
        // Predicated region
        $region13: #{model_forward.10} parent=11 // pred_check
          %p233 = pneg %p141
        $region14: #{model_forward.10} parent=11 // pred_check_branch
          %235 = sbr.rel (%p233) target = $region16
        $region15: #{model_forward.10} parent=11 // pred_region
          %s237 = ssub.s32 256, 256
          %238 = vsyncadd [#allocation9], %s237
          %s239 = sshll.u32 [#allocation8], 4
          %s240 = int_to_ptr.vmem [resolvable:$true] %s239
          %245 = dma.hbm_to_vmem [thread:$0]  %s3, 256, %s240, [#allocation9], 64, 64, 4
        $region16: #{model_forward.10} parent=11 // pred_fallthru
          _
        // Predicated region
        $region17: #{model_forward.10} parent=11 // pred_check
          %p246 = pneg %p162
        $region18: #{model_forward.10} parent=11 // pred_check_branch
          %248 = sbr.rel (%p246) target = $region20
        $region19: #{model_forward.10} parent=11 // pred_region
          %s250 = ssub.s32 16, 16
          %251 = vsyncadd [#allocation9], %s250
          %s253 = sshll.u32 [#allocation10], 4
          %s254 = int_to_ptr.vmem [resolvable:$true] %s253
          %256 = dma.hbm_to_vmem [thread:$0]  %s4, 16, %s254, [#allocation9]
        $region20: #{model_forward.10} parent=11 // pred_fallthru
          _
      $region12: #{model_forward.10} parent=5 // pred_fallthru
        _
      %p257 = scmp.lt.s32.totalorder %s26, 2
      // Predicated region
      $region21: #{model_forward.10} parent=5 // pred_check
        %p258 = pneg %p257
      $region22: #{model_forward.10} parent=5 // pred_check_branch
        %260 = sbr.rel (%p258) target = $region24
      $region23: #{model_forward.10} parent=5 // pred_region
        // Predicated region
        $region25: #{model_forward.10} parent=23 // pred_check
          %p261 = pneg %p60
        $region26: #{model_forward.10} parent=23 // pred_check_branch
          %263 = sbr.rel (%p261) target = $region28
        $region27: #{model_forward.10} parent=23 // pred_region
          %s264 = sand.u32 %s50, 1
          %s265 = scalar_lea.sflag [#allocation3], %s264
          %s266 = sand.u32 %s50, 1
          %s267 = smul.addr %s266, 32
          %s268 = scalar_lea.vmem [#allocation2], %s267
          %s269 = smul.u32 8, %s34
          %s271 = ssub.s32 512, 512
          %272 = vsyncadd %s265, %s271
          %s273 = smul.addr %s33, 8
          %s274 = sadd.s32 %s269, %s273
          %s275 = smul.addr %s274, 64
          %s276 = scalar_lea.hbm %s0, %s275
          %s277 = sshll.u32 %s268, 4
          %s278 = int_to_ptr.vmem [resolvable:$true] %s277
          %283 = dma.hbm_to_vmem [thread:$0]  %s276, 512, %s278, %s265, 64, 64, 4
        $region28: #{model_forward.10} parent=23 // pred_fallthru
          _
        // Predicated region
        $region29: #{model_forward.10} parent=23 // pred_check
          %p284 = pneg %p86
        $region30: #{model_forward.10} parent=23 // pred_check_branch
          %286 = sbr.rel (%p284) target = $region32
        $region31: #{model_forward.10} parent=23 // pred_region
          %s287 = sand.u32 %s26, 1
          %s288 = scalar_lea.sflag [#allocation6], %s287
          %s289 = sand.u32 %s76, 1
          %s290 = smul.addr %s289, 8
          %s291 = scalar_lea.vmem [#allocation5], %s290
          %s293 = ssub.s32 128, 128
          %294 = vsyncadd %s288, %s293
          %s295 = smul.addr %s33, 128
          %s296 = scalar_lea.hbm %s1, %s295
          %s298 = sshll.u32 %s291, 4
          %s299 = int_to_ptr.vmem [resolvable:$true] %s298
          %301 = dma.hbm_to_vmem [thread:$0]  %s296, 128, %s299, %s288
        $region32: #{model_forward.10} parent=23 // pred_fallthru
          _
        // Predicated region
        $region33: #{model_forward.10} parent=23 // pred_check
          %p302 = pneg %p114
        $region34: #{model_forward.10} parent=23 // pred_check_branch
          %304 = sbr.rel (%p302) target = $region36
        $region35: #{model_forward.10} parent=23 // pred_region
          %s305 = sand.u32 %s26, 1
          %s306 = scalar_lea.sflag [#allocation6], %s305
          %s307 = sand.u32 %s104, 1
          %s308 = smul.addr %s307, 8
          %s309 = scalar_lea.vmem [#allocation7], %s308
          %s311 = ssub.s32 128, 128
          %312 = vsyncadd %s306, %s311
          %s313 = sadd.s32 %s34, %s33
          %s314 = smul.addr %s313, 128
          %s315 = scalar_lea.hbm %s2, %s314
          %s317 = sshll.u32 %s309, 4
          %s318 = int_to_ptr.vmem [resolvable:$true] %s317
          %320 = dma.hbm_to_vmem [thread:$0]  %s315, 128, %s318, %s306
        $region36: #{model_forward.10} parent=23 // pred_fallthru
          _
      $region24: #{model_forward.10} parent=5 // pred_fallthru
        _
      %p321 = scmp.le.s32.totalorder 1, %s26
      %p322 = scmp.lt.s32.totalorder %s26, 3
      %p323 = pnand %p321, %p322
      %p324 = pneg %p323
      // Predicated region
      $region37: #{model_forward.10} parent=5 // pred_check
        _
      $region38: #{model_forward.10} parent=5 // pred_check_branch
        %326 = sbr.rel (%p323) target = $region40
      $region39: #{model_forward.10} parent=5 // pred_region
        %s327 = ssub.s32 %s26, 1
        %s328 = sand.u32 %s53, 1
        %s329 = scalar_lea.sflag [#allocation3], %s328
        %s330 = sand.u32 %s53, 1
        %s331 = smul.addr %s330, 32
        %s332 = scalar_lea.vmem [#allocation2], %s331
        // Predicated region
        $region41: #{model_forward.10} parent=39 // pred_check
          %p333 = pneg %p66
        $region42: #{model_forward.10} parent=39 // pred_check_branch
          %335 = sbr.rel (%p333) target = $region44
        $region43: #{model_forward.10} parent=39 // pred_region
          %336 = dma.done %s329, 512
        $region44: #{model_forward.10} parent=39 // pred_fallthru
          _
        %s337 = sand.u32 %s31, 1
        %s338 = scalar_lea.sflag [#allocation6], %s337
        %s339 = sand.u32 %s79, 1
        %s340 = smul.addr %s339, 8
        %s341 = scalar_lea.vmem [#allocation5], %s340
        // Predicated region
        $region45: #{model_forward.10} parent=39 // pred_check
          %p342 = pneg %p92
        $region46: #{model_forward.10} parent=39 // pred_check_branch
          %344 = sbr.rel (%p342) target = $region48
        $region47: #{model_forward.10} parent=39 // pred_region
          %345 = dma.done %s338, 128
        $region48: #{model_forward.10} parent=39 // pred_fallthru
          _
        %s346 = sand.u32 %s31, 1
        %s347 = scalar_lea.sflag [#allocation6], %s346
        %s348 = sand.u32 %s107, 1
        %s349 = smul.addr %s348, 8
        %s350 = scalar_lea.vmem [#allocation7], %s349
        // Predicated region
        $region49: #{model_forward.10} parent=39 // pred_check
          %p351 = pneg %p120
        $region50: #{model_forward.10} parent=39 // pred_check_branch
          %353 = sbr.rel (%p351) target = $region52
        $region51: #{model_forward.10} parent=39 // pred_region
          %354 = dma.done %s347, 128
        $region52: #{model_forward.10} parent=39 // pred_fallthru
          _
        // Predicated region
        $region53: #{model_forward.10} parent=39 // pred_check
          %p355 = pneg %p141
        $region54: #{model_forward.10} parent=39 // pred_check_branch
          %357 = sbr.rel (%p355) target = $region56
        $region55: #{model_forward.10} parent=39 // pred_region
          %358 = dma.done [#allocation9], 256
        $region56: #{model_forward.10} parent=39 // pred_fallthru
          _
        // Predicated region
        $region57: #{model_forward.10} parent=39 // pred_check
          %p359 = pneg %p162
        $region58: #{model_forward.10} parent=39 // pred_check_branch
          %361 = sbr.rel (%p359) target = $region60
        $region59: #{model_forward.10} parent=39 // pred_region
          %362 = dma.done [#allocation9], 16
        $region60: #{model_forward.10} parent=39 // pred_fallthru
          _
        %s363 = sand.u32 %s53, 1
        %s364 = scalar_lea.sflag [#allocation3], %s363
        %s365 = sand.u32 %s53, 1
        %s366 = smul.addr %s365, 32
        %s367 = scalar_lea.vmem [#allocation2], %s366
        %p368 = pneg %p66
        %p369 = pneg %p63
        %s370 = sand.u32 %s31, 1
        %s371 = scalar_lea.sflag [#allocation6], %s370
        %s372 = sand.u32 %s79, 1
        %s373 = smul.addr %s372, 8
        %s374 = scalar_lea.vmem [#allocation5], %s373
        %p375 = pneg %p92
        %p376 = pneg %p89
        %s377 = sand.u32 %s31, 1
        %s378 = scalar_lea.sflag [#allocation6], %s377
        %s379 = sand.u32 %s107, 1
        %s380 = smul.addr %s379, 8
        %s381 = scalar_lea.vmem [#allocation7], %s380
        %p382 = pneg %p120
        %p383 = pneg %p117
        %p384 = pneg %p141
        %p385 = pneg %p138
        %p386 = pneg %p162
        %p387 = pneg %p159
        %p388 = pneg %p190
        %p389 = pneg %p187
        %s390 = sand.u32 %s177, 1
        %s391 = scalar_lea.sflag [#allocation4], %s390
        %s392 = sand.u32 %s177, 1
        %s393 = smul.addr %s392, 8
        %s394 = scalar_lea.vmem [#allocation11], %s393
        %p395 = pneg %p218
        %p396 = pneg %p215
        %s397 = sand.u32 %s205, 1
        %s398 = scalar_lea.sflag [#allocation13], %s397
        %s399 = sand.u32 %s205, 1
        %s400 = smul.addr %s399, 32
        %s401 = scalar_lea.vmem [#allocation12], %s400
        %s402 = smul.u32 8, %s36
        %s403 = smul.u32 8, %s36
        %s405 = smul.u32 %s36, 8
        %v406 = vld [vmem:[%s332] sm:$0xf]
        %v407 = vld [vmem:[%s332 + $0x4] sm:$0xf]
        %v408 = vld [vmem:[%s332 + $0x8] sm:$0xf]
        %v409 = vld [vmem:[%s332 + $0xc] sm:$0xf]
        %v410 = vld [vmem:[%s332 + $0x10] sm:$0xf]
        %v411 = vld [vmem:[%s332 + $0x14] sm:$0xf]
        %v412 = vld [vmem:[%s332 + $0x18] sm:$0xf]
        %v413 = vld [vmem:[%s332 + $0x1c] sm:$0xf]
        %v414 = vunpack.c.l.bf16 %v406
        %v415 = vunpack.c.l.bf16 %v407
        %v416 = vunpack.c.l.bf16 %v408
        %v417 = vunpack.c.l.bf16 %v409
        %v418 = vunpack.c.l.bf16 %v410
        %v419 = vunpack.c.l.bf16 %v411
        %v420 = vunpack.c.l.bf16 %v412
        %v421 = vunpack.c.l.bf16 %v413
        %v422 = vxor.u32 %v414, 2147483648
        %v423 = vxor.u32 %v415, 2147483648
        %v424 = vxor.u32 %v416, 2147483648
        %v425 = vxor.u32 %v417, 2147483648
        %v426 = vxor.u32 %v418, 2147483648
        %v427 = vxor.u32 %v419, 2147483648
        %v428 = vxor.u32 %v420, 2147483648
        %v429 = vxor.u32 %v421, 2147483648
        %v430 = vmul.f32 %v422, 1.442695
        %v431 = vpow.pop %v430
        %v432 = vmul.f32 %v423, 1.442695
        %v433 = vpow.pop %v432
        %v434 = vmul.f32 %v424, 1.442695
        %v435 = vpow.pop %v434
        %v436 = vmul.f32 %v425, 1.442695
        %v437 = vpow.pop %v436
        %v438 = vmul.f32 %v426, 1.442695
        %v439 = vpow.pop %v438
        %v440 = vmul.f32 %v427, 1.442695
        %v441 = vpow.pop %v440
        %v442 = vmul.f32 %v428, 1.442695
        %v443 = vpow.pop %v442
        %v444 = vmul.f32 %v429, 1.442695
        %v445 = vpow.pop %v444
        %v446 = vadd.f32 %v431, 1.0
        %v447 = vadd.f32 %v433, 1.0
        %v448 = vadd.f32 %v435, 1.0
        %v449 = vadd.f32 %v437, 1.0
        %v450 = vadd.f32 %v439, 1.0
        %v451 = vadd.f32 %v441, 1.0
        %v452 = vadd.f32 %v443, 1.0
        %v453 = vadd.f32 %v445, 1.0
        %v454 = vrcp.pop %v446
        %v455 = vmul.f32 1.0, %v454
        %v456 = vrcp.pop %v447
        %v457 = vmul.f32 1.0, %v456
        %v458 = vrcp.pop %v448
        %v459 = vmul.f32 1.0, %v458
        %v460 = vrcp.pop %v449
        %v461 = vmul.f32 1.0, %v460
        %v462 = vrcp.pop %v450
        %v463 = vmul.f32 1.0, %v462
        %v464 = vrcp.pop %v451
        %v465 = vmul.f32 1.0, %v464
        %v466 = vrcp.pop %v452
        %v467 = vmul.f32 1.0, %v466
        %v468 = vrcp.pop %v453
        %v469 = vmul.f32 1.0, %v468
        %v470 = vld [vmem:[%s341] sm:$0xff]
        %s471 = scalar_lea.vmem %s341, %s405 [#allocation5]
        %v472 = vld [vmem:[%s471] sm:$0xff]
        %474 = vrot.lane.b32.xlu0 %v470, 96
        %v475 = vpop.permute.xlu0 %474
        %v477 = vmul.f32 %v455, %v475
        %v478 = vmul.f32 %v457, %v475
        %v479 = vmul.f32 %v459, %v475
        %v480 = vmul.f32 %v461, %v475
        %v481 = vmul.f32 %v463, %v475
        %v482 = vmul.f32 %v465, %v475
        %v483 = vmul.f32 %v467, %v475
        %v484 = vmul.f32 %v469, %v475
        %vm485 = vcmask 261120
        %v486 = vsel %vm485, %v477, 0.0
        %v487 = vrot.slane %v486, 4
        %v488 = vadd.f32 %v486, %v487
        %v489 = vrot.slane %v488, 2
        %v490 = vadd.f32 %v488, %v489
        %v491 = vrot.slane %v490, 1
        %v492 = vadd.f32 %v490, %v491
        %v493 = vsel %vm485, %v478, 0.0
        %v494 = vrot.slane %v493, 4
        %v495 = vadd.f32 %v493, %v494
        %v496 = vrot.slane %v495, 2
        %v497 = vadd.f32 %v495, %v496
        %v498 = vrot.slane %v497, 1
        %v499 = vadd.f32 %v497, %v498
        %v500 = vsel %vm485, %v479, 0.0
        %v501 = vrot.slane %v500, 4
        %v502 = vadd.f32 %v500, %v501
        %v503 = vrot.slane %v502, 2
        %v504 = vadd.f32 %v502, %v503
        %v505 = vrot.slane %v504, 1
        %v506 = vadd.f32 %v504, %v505
        %v507 = vsel %vm485, %v480, 0.0
        %v508 = vrot.slane %v507, 4
        %v509 = vadd.f32 %v507, %v508
        %v510 = vrot.slane %v509, 2
        %v511 = vadd.f32 %v509, %v510
        %v512 = vrot.slane %v511, 1
        %v513 = vadd.f32 %v511, %v512
        %v514 = vsel %vm485, %v481, 0.0
        %v515 = vrot.slane %v514, 4
        %v516 = vadd.f32 %v514, %v515
        %v517 = vrot.slane %v516, 2
        %v518 = vadd.f32 %v516, %v517
        %v519 = vrot.slane %v518, 1
        %v520 = vadd.f32 %v518, %v519
        %v521 = vsel %vm485, %v482, 0.0
        %v522 = vrot.slane %v521, 4
        %v523 = vadd.f32 %v521, %v522
        %v524 = vrot.slane %v523, 2
        %v525 = vadd.f32 %v523, %v524
        %v526 = vrot.slane %v525, 1
        %v527 = vadd.f32 %v525, %v526
        %v528 = vsel %vm485, %v483, 0.0
        %v529 = vrot.slane %v528, 4
        %v530 = vadd.f32 %v528, %v529
        %v531 = vrot.slane %v530, 2
        %v532 = vadd.f32 %v530, %v531
        %v533 = vrot.slane %v532, 1
        %v534 = vadd.f32 %v532, %v533
        %v535 = vsel %vm485, %v484, 0.0
        %v536 = vrot.slane %v535, 4
        %v537 = vadd.f32 %v535, %v536
        %v538 = vrot.slane %v537, 2
        %v539 = vadd.f32 %v537, %v538
        %v540 = vrot.slane %v539, 1
        %v541 = vadd.f32 %v539, %v540
        %v542 = vsel %vm485, %v455, 0.0
        %v543 = vrot.slane %v542, 4
        %v544 = vadd.f32 %v542, %v543
        %v545 = vrot.slane %v544, 2
        %v546 = vadd.f32 %v544, %v545
        %v547 = vrot.slane %v546, 1
        %v548 = vadd.f32 %v546, %v547
        %v549 = vsel %vm485, %v457, 0.0
        %v550 = vrot.slane %v549, 4
        %v551 = vadd.f32 %v549, %v550
        %v552 = vrot.slane %v551, 2
        %v553 = vadd.f32 %v551, %v552
        %v554 = vrot.slane %v553, 1
        %v555 = vadd.f32 %v553, %v554
        %v556 = vsel %vm485, %v459, 0.0
        %v557 = vrot.slane %v556, 4
        %v558 = vadd.f32 %v556, %v557
        %v559 = vrot.slane %v558, 2
        %v560 = vadd.f32 %v558, %v559
        %v561 = vrot.slane %v560, 1
        %v562 = vadd.f32 %v560, %v561
        %v563 = vsel %vm485, %v461, 0.0
        %v564 = vrot.slane %v563, 4
        %v565 = vadd.f32 %v563, %v564
        %v566 = vrot.slane %v565, 2
        %v567 = vadd.f32 %v565, %v566
        %v568 = vrot.slane %v567, 1
        %v569 = vadd.f32 %v567, %v568
        %v570 = vsel %vm485, %v463, 0.0
        %v571 = vrot.slane %v570, 4
        %v572 = vadd.f32 %v570, %v571
        %v573 = vrot.slane %v572, 2
        %v574 = vadd.f32 %v572, %v573
        %v575 = vrot.slane %v574, 1
        %v576 = vadd.f32 %v574, %v575
        %v577 = vsel %vm485, %v465, 0.0
        %v578 = vrot.slane %v577, 4
        %v579 = vadd.f32 %v577, %v578
        %v580 = vrot.slane %v579, 2
        %v581 = vadd.f32 %v579, %v580
        %v582 = vrot.slane %v581, 1
        %v583 = vadd.f32 %v581, %v582
        %v584 = vsel %vm485, %v467, 0.0
        %v585 = vrot.slane %v584, 4
        %v586 = vadd.f32 %v584, %v585
        %v587 = vrot.slane %v586, 2
        %v588 = vadd.f32 %v586, %v587
        %v589 = vrot.slane %v588, 1
        %v590 = vadd.f32 %v588, %v589
        %v591 = vsel %vm485, %v469, 0.0
        %v592 = vrot.slane %v591, 4
        %v593 = vadd.f32 %v591, %v592
        %v594 = vrot.slane %v593, 2
        %v595 = vadd.f32 %v593, %v594
        %v596 = vrot.slane %v595, 1
        %v597 = vadd.f32 %v595, %v596
        %v598 = vadd.f32 %v548, 1e-20
        %v599 = vadd.f32 %v555, 1e-20
        %v600 = vadd.f32 %v562, 1e-20
        %v601 = vadd.f32 %v569, 1e-20
        %v602 = vadd.f32 %v576, 1e-20
        %v603 = vadd.f32 %v583, 1e-20
        %v604 = vadd.f32 %v590, 1e-20
        %v605 = vadd.f32 %v597, 1e-20
        %v606 = vrcp.pop %v598
        %v607 = vmul.f32 %v492, %v606
        %v608 = vrcp.pop %v599
        %v609 = vmul.f32 %v499, %v608
        %v610 = vrcp.pop %v600
        %v611 = vmul.f32 %v506, %v610
        %v612 = vrcp.pop %v601
        %v613 = vmul.f32 %v513, %v612
        %v614 = vrcp.pop %v602
        %v615 = vmul.f32 %v520, %v614
        %v616 = vrcp.pop %v603
        %v617 = vmul.f32 %v527, %v616
        %v618 = vrcp.pop %v604
        %v619 = vmul.f32 %v534, %v618
        %v620 = vrcp.pop %v605
        %v621 = vmul.f32 %v541, %v620
        %v622 = vld [vmem:[%s350] sm:$0xff]
        %vm631 = vcmask 1041409
        %v632 = vsel %vm631, %v609, %v607
        %vm633 = vcmask 1042434
        %v634 = vsel %vm633, %v611, %v632
        %vm635 = vcmask 1043459
        %v636 = vsel %vm635, %v613, %v634
        %vm637 = vcmask 1044484
        %v638 = vsel %vm637, %v615, %v636
        %vm639 = vcmask 1045509
        %v640 = vsel %vm639, %v617, %v638
        %vm641 = vcmask 1046534
        %v642 = vsel %vm641, %v619, %v640
        %vm643 = vcmask 1047559
        %v644 = vsel %vm643, %v621, %v642
        %v646 = vadd.f32 %v472, %v644
        %v647 = vmax.f32 %v646, 0.0
        %v648 = vadd.f32 %v622, %v647
        %649 = vst.msk [vmem:[%s394] sm:$0xff] %vm485, %v648
        %v650 = vld [vmem:[#allocation8] sm:$0xf]
        %v651 = vld [vmem:[#allocation8 + $0x4] sm:$0xf]
        %v652 = vld [vmem:[#allocation8 + $0x8] sm:$0xf]
        %v653 = vld [vmem:[#allocation8 + $0xc] sm:$0xf]
        %v654 = vld [vmem:[#allocation10] sm:$0x1]
        %v656 = vlaneseq
        %v657 = vshrl.u32 %v656, 7
        %v658 = vsub.s32 0, %v657
        %v659 = vrot.slane %v654, %v658
        %v669 = vunpack.c.l.b16 %v406
        %v670 = vunpack.c.l.b16 %v407
        %v671 = vunpack.c.l.b16 %v408
        %v672 = vunpack.c.l.b16 %v409
        %v673 = vunpack.c.l.b16 %v410
        %v674 = vunpack.c.l.b16 %v411
        %v675 = vunpack.c.l.b16 %v412
        %v676 = vunpack.c.l.b16 %v413
        %v677 = vpack.c.b16 %v670, %v669
        %v678 = vpack.c.b16 %v672, %v671
        %v679 = vpack.c.b16 %v674, %v673
        %v680 = vpack.c.b16 %v676, %v675
        %v685 = vunpack.c.l.b16 %v650
        %v686 = vunpack.c.l.b16 %v651
        %v687 = vunpack.c.l.b16 %v652
        %v688 = vunpack.c.l.b16 %v653
        %v689 = vpack.c.b16 %v686, %v685
        %v690 = vpack.c.b16 %v688, %v687
        %v694 = vsel %vm485, %v677, 0
        %v697 = vsel %vm485, %v678, 0
        %v700 = vsel %vm485, %v679, 0
        %v703 = vsel %vm485, %v680, 0
        %705 = vmatprep.subr.bf16.mxu0 0
        %706 = vmatpush1.bf16.msra.mxu0 %v689
        %707 = vmatprep.subr.bf16.mxu0 0
        %708 = vmatpush1.bf16.msra.mxu0 %v690
        %709 = vmatprep.subr.bf16.mxu0 0
        %710 = vmatpush1.bf16.msra.mxu0 0
        %711 = vmatprep.subr.bf16.mxu0 0
        %712 = vmatpush1.bf16.msra.mxu0 0
        %713 = vmatprep.subr.bf16.mxu0 0
        %714 = vmatpush1.bf16.msra.mxu0 0
        %715 = vmatprep.subr.bf16.mxu0 0
        %716 = vmatpush1.bf16.msra.mxu0 0
        %717 = vmatprep.subr.bf16.mxu0 0
        %718 = vmatpush1.bf16.msra.mxu0 0
        %719 = vmatprep.subr.bf16.mxu0 0
        %720 = vmatpush1.bf16.msra.mxu0 0
        %721 = vmatprep.subr.bf16.mxu0 0
        %722 = vmatpush1.bf16.msra.mxu0 0
        %723 = vmatprep.subr.bf16.mxu0 0
        %724 = vmatpush1.bf16.msra.mxu0 0
        %725 = vmatprep.subr.bf16.mxu0 0
        %726 = vmatpush1.bf16.msra.mxu0 0
        %727 = vmatprep.subr.bf16.mxu0 0
        %728 = vmatpush1.bf16.msra.mxu0 0
        %729 = vmatprep.subr.bf16.mxu0 0
        %730 = vmatpush1.bf16.msra.mxu0 0
        %731 = vmatprep.subr.bf16.mxu0 0
        %732 = vmatpush1.bf16.msra.mxu0 0
        %733 = vmatprep.subr.bf16.mxu0 0
        %734 = vmatpush1.bf16.msra.mxu0 0
        %735 = vmatprep.subr.bf16.mxu0 0
        %736 = vmatpush1.bf16.msra.mxu0 0
        %737 = vmatprep.mubr.bf16.mxu0 0
        %738 = vmatmul.mubr.bf16.gmra.mrb[0].mxu0 %v694
        %v739 = vpop.f32.mrb[0].mxu0
        %v740 = vadd.f32 %v659, %v739
        %v741 = vpop.f32.mrb[0].mxu0
        %v742 = vpop.f32.mrb[0].mxu0
        %v743 = vadd.f32 %v659, %v742
        %v744 = vpop.f32.mrb[0].mxu0
        %745 = vmatprep.mubr.bf16.mxu0 0
        %746 = vmatmul.mubr.bf16.gmra.mrb[0].mxu0 %v697
        %v747 = vpop.f32.mrb[0].mxu0
        %v748 = vadd.f32 %v659, %v747
        %v749 = vpop.f32.mrb[0].mxu0
        %v750 = vpop.f32.mrb[0].mxu0
        %v751 = vadd.f32 %v659, %v750
        %v752 = vpop.f32.mrb[0].mxu0
        %753 = vmatprep.mubr.bf16.mxu0 0
        %754 = vmatmul.mubr.bf16.gmra.mrb[0].mxu0 %v700
        %v755 = vpop.f32.mrb[0].mxu0
        %v756 = vadd.f32 %v659, %v755
        %v757 = vpop.f32.mrb[0].mxu0
        %v758 = vpop.f32.mrb[0].mxu0
        %v759 = vadd.f32 %v659, %v758
        %v760 = vpop.f32.mrb[0].mxu0
        %761 = vmatprep.mubr.bf16.mxu0 0
        %762 = vmatmul.mubr.bf16.gmra.mrb[0].mxu0 %v703
        %v763 = vpop.f32.mrb[0].mxu0
        %v764 = vadd.f32 %v659, %v763
        %v765 = vpop.f32.mrb[0].mxu0
        %v766 = vpop.f32.mrb[0].mxu0
        %v767 = vadd.f32 %v659, %v766
        %v768 = vpop.f32.mrb[0].mxu0
        %769 = vdwg.mxu0
        %v771 = vcombine.high %v472, %v472
        %v773 = vunpack.c.l.s4 1966171168
        %v774 = vunpack.c.0.s8 %v773
        %v775 = vlaneseq
        %v776 = vshrl.u32 %v775, 7
        %v777 = vsub.s32 %v774, %v776
        %v778 = vrot.slane %v472, %v777
        %v780 = vunpack.c.l.s4 1966171168
        %v781 = vunpack.c.0.s8 %v780
        %v782 = vlaneseq
        %v783 = vshrl.u32 %v782, 7
        %v784 = vsub.s32 %v781, %v783
        %v785 = vrot.slane %v771, %v784
        %v786 = vcombine.high %v778, %v778
        %v787 = vcombine.high %v785, %v785
        %v789 = vunpack.c.l.s4 1966171168
        %v790 = vunpack.c.0.s8 %v789
        %v791 = vlaneseq
        %v792 = vshrl.u32 %v791, 7
        %v793 = vsub.s32 %v790, %v792
        %v794 = vrot.slane %v778, %v793
        %v796 = vunpack.c.l.s4 1966171168
        %v797 = vunpack.c.0.s8 %v796
        %v798 = vlaneseq
        %v799 = vshrl.u32 %v798, 7
        %v800 = vsub.s32 %v797, %v799
        %v801 = vrot.slane %v785, %v800
        %v803 = vunpack.c.l.s4 1966171168
        %v804 = vunpack.c.0.s8 %v803
        %v805 = vlaneseq
        %v806 = vshrl.u32 %v805, 7
        %v807 = vsub.s32 %v804, %v806
        %v808 = vrot.slane %v786, %v807
        %v810 = vunpack.c.l.s4 1966171168
        %v811 = vunpack.c.0.s8 %v810
        %v812 = vlaneseq
        %v813 = vshrl.u32 %v812, 7
        %v814 = vsub.s32 %v811, %v813
        %v815 = vrot.slane %v787, %v814
        %v816 = vcombine.high %v794, %v794
        %v817 = vcombine.high %v801, %v801
        %v818 = vcombine.high %v808, %v808
        %v819 = vcombine.high %v815, %v815
        %v820 = vlaneseq
        %v821 = vshrl.u32 %v820, 7
        %v822 = vsub.s32 0, %v821
        %v823 = vrot.slane %v794, %v822
        %v824 = vlaneseq
        %v825 = vshrl.u32 %v824, 7
        %v826 = vsub.s32 0, %v825
        %v827 = vrot.slane %v808, %v826
        %v828 = vlaneseq
        %v829 = vshrl.u32 %v828, 7
        %v830 = vsub.s32 0, %v829
        %v831 = vrot.slane %v816, %v830
        %v832 = vlaneseq
        %v833 = vshrl.u32 %v832, 7
        %v834 = vsub.s32 0, %v833
        %v835 = vrot.slane %v818, %v834
        %v836 = vlaneseq
        %v837 = vshrl.u32 %v836, 7
        %v838 = vsub.s32 0, %v837
        %v839 = vrot.slane %v801, %v838
        %v840 = vlaneseq
        %v841 = vshrl.u32 %v840, 7
        %v842 = vsub.s32 0, %v841
        %v843 = vrot.slane %v815, %v842
        %v844 = vlaneseq
        %v845 = vshrl.u32 %v844, 7
        %v846 = vsub.s32 0, %v845
        %v847 = vrot.slane %v817, %v846
        %v848 = vlaneseq
        %v849 = vshrl.u32 %v848, 7
        %v850 = vsub.s32 0, %v849
        %v851 = vrot.slane %v819, %v850
        %852 = vrot.lane.b32.xlu0 %v823, 64
        %v853 = vpop.permute.xlu0 %852
        %854 = vrot.lane.b32.xlu0 %v827, 64
        %v855 = vpop.permute.xlu0 %854
        %856 = vrot.lane.b32.xlu0 %v831, 64
        %v857 = vpop.permute.xlu0 %856
        %858 = vrot.lane.b32.xlu0 %v835, 64
        %v859 = vpop.permute.xlu0 %858
        %860 = vrot.lane.b32.xlu0 %v839, 64
        %v861 = vpop.permute.xlu0 %860
        %862 = vrot.lane.b32.xlu0 %v843, 64
        %v863 = vpop.permute.xlu0 %862
        %864 = vrot.lane.b32.xlu0 %v847, 64
        %v865 = vpop.permute.xlu0 %864
        %866 = vrot.lane.b32.xlu0 %v851, 64
        %v867 = vpop.permute.xlu0 %866
        %v876 = vadd.f32 %v740, %v853
        %v877 = vadd.f32 %v743, %v855
        %v878 = vadd.f32 %v748, %v857
        %v879 = vadd.f32 %v751, %v859
        %v880 = vadd.f32 %v756, %v861
        %v881 = vadd.f32 %v759, %v863
        %v882 = vadd.f32 %v764, %v865
        %v883 = vadd.f32 %v767, %v867
        %884 = vrot.lane.b32.xlu0 %v470, 32
        %v885 = vpop.permute.xlu0 %884
        %v887 = vadd.f32 %v876, %v885
        %v888 = vadd.f32 %v877, %v885
        %v889 = vadd.f32 %v878, %v885
        %v890 = vadd.f32 %v879, %v885
        %v891 = vadd.f32 %v880, %v885
        %v892 = vadd.f32 %v881, %v885
        %v893 = vadd.f32 %v882, %v885
        %v894 = vadd.f32 %v883, %v885
        %v895 = vmax.f32 %v887, 0.0
        %v896 = vmax.f32 %v888, 0.0
        %v897 = vmax.f32 %v889, 0.0
        %v898 = vmax.f32 %v890, 0.0
        %v899 = vmax.f32 %v891, 0.0
        %v900 = vmax.f32 %v892, 0.0
        %v901 = vmax.f32 %v893, 0.0
        %v902 = vmax.f32 %v894, 0.0
        %v903 = vadd.f32 %v414, %v895
        %v904 = vadd.f32 %v415, %v896
        %v905 = vadd.f32 %v416, %v897
        %v906 = vadd.f32 %v417, %v898
        %v907 = vadd.f32 %v418, %v899
        %v908 = vadd.f32 %v419, %v900
        %v909 = vadd.f32 %v420, %v901
        %v910 = vadd.f32 %v421, %v902
        %v911 = vpack.c.bf16 %v903, %v903
        %v912 = vpack.c.bf16 %v904, %v904
        %v913 = vpack.c.bf16 %v905, %v905
        %v914 = vpack.c.bf16 %v906, %v906
        %v915 = vpack.c.bf16 %v907, %v907
        %v916 = vpack.c.bf16 %v908, %v908
        %v917 = vpack.c.bf16 %v909, %v909
        %v918 = vpack.c.bf16 %v910, %v910
        %vm919 = vcmask 257024
        %920 = vst.msk [vmem:[%s401] sm:$0xf] %vm919, %v911
        %921 = vst.msk [vmem:[%s401 + $0x4] sm:$0xf] %vm919, %v912
        %922 = vst.msk [vmem:[%s401 + $0x8] sm:$0xf] %vm919, %v913
        %923 = vst.msk [vmem:[%s401 + $0xc] sm:$0xf] %vm919, %v914
        %924 = vst.msk [vmem:[%s401 + $0x10] sm:$0xf] %vm919, %v915
        %925 = vst.msk [vmem:[%s401 + $0x14] sm:$0xf] %vm919, %v916
        %926 = vst.msk [vmem:[%s401 + $0x18] sm:$0xf] %vm919, %v917
        %927 = vst.msk [vmem:[%s401 + $0x1c] sm:$0xf] %vm919, %v918
        %s928 = sand.u32 %s177, 1
        %s929 = scalar_lea.sflag [#allocation4], %s928
        %s930 = sand.u32 %s177, 1
        %s931 = smul.addr %s930, 8
        %s932 = scalar_lea.vmem [#allocation11], %s931
        %s933 = sand.u32 %s205, 1
        %s934 = scalar_lea.sflag [#allocation13], %s933
        %s935 = sand.u32 %s205, 1
        %s936 = smul.addr %s935, 32
        %s937 = scalar_lea.vmem [#allocation12], %s936
        // Predicated region
        $region61: #{model_forward.10} parent=39 // pred_check
          %p938 = pneg %p187
        $region62: #{model_forward.10} parent=39 // pred_check_branch
          %940 = sbr.rel (%p938) target = $region64
        $region63: #{model_forward.10} parent=39 // pred_region
          %s942 = ssub.s32 128, 128
          %943 = vsyncadd %s929, %s942
          %s944 = sadd.s32 %s36, %s35
          %s945 = smul.addr %s944, 128
          %s946 = scalar_lea.hbm %s5, %s945
          %s948 = sshll.u32 %s932, 4
          %s949 = int_to_ptr.vmem [resolvable:$true] %s948
          %951 = dma.vmem_to_hbm [thread:$0]  %s949, 128, %s946, %s929
        $region64: #{model_forward.10} parent=39 // pred_fallthru
          _
        // Predicated region
        $region65: #{model_forward.10} parent=39 // pred_check
          %p952 = pneg %p215
        $region66: #{model_forward.10} parent=39 // pred_check_branch
          %954 = sbr.rel (%p952) target = $region68
        $region67: #{model_forward.10} parent=39 // pred_region
          %s955 = smul.u32 8, %s36
          %s957 = ssub.s32 512, 512
          %958 = vsyncadd %s934, %s957
          %s959 = smul.addr %s35, 8
          %s960 = sadd.s32 %s955, %s959
          %s961 = smul.addr %s960, 64
          %s962 = scalar_lea.hbm %s6, %s961
          %s963 = sshll.u32 %s937, 4
          %s964 = int_to_ptr.vmem [resolvable:$true] %s963
          %969 = dma.vmem_to_hbm [thread:$0]  %s964, 512, %s962, %s934, 64, 64, 4
        $region68: #{model_forward.10} parent=39 // pred_fallthru
          _
      $region40: #{model_forward.10} parent=5 // pred_fallthru
        _
      %p970 = scmp.le.s32.totalorder 2, %s26
      // Predicated region
      $region69: #{model_forward.10} parent=5 // pred_check
        %p971 = pneg %p970
      $region70: #{model_forward.10} parent=5 // pred_check_branch
        %973 = sbr.rel (%p971) target = $region72
      $region71: #{model_forward.10} parent=5 // pred_region
        %s974 = ssub.s32 %s26, 2
        // Predicated region
        $region73: #{model_forward.10} parent=71 // pred_check
          %p975 = pneg %p193
        $region74: #{model_forward.10} parent=71 // pred_check_branch
          %977 = sbr.rel (%p975) target = $region76
        $region75: #{model_forward.10} parent=71 // pred_region
          %s978 = sand.u32 %s178, 1
          %s979 = scalar_lea.sflag [#allocation4], %s978
          %s980 = sand.u32 %s178, 1
          %s981 = smul.addr %s980, 8
          %s982 = scalar_lea.vmem [#allocation11], %s981
          %983 = dma.done %s979, 128
        $region76: #{model_forward.10} parent=71 // pred_fallthru
          _
        // Predicated region
        $region77: #{model_forward.10} parent=71 // pred_check
          %p984 = pneg %p221
        $region78: #{model_forward.10} parent=71 // pred_check_branch
          %986 = sbr.rel (%p984) target = $region80
        $region79: #{model_forward.10} parent=71 // pred_region
          %s987 = sand.u32 %s206, 1
          %s988 = scalar_lea.sflag [#allocation13], %s987
          %s989 = sand.u32 %s206, 1
          %s990 = smul.addr %s989, 32
          %s991 = scalar_lea.vmem [#allocation12], %s990
          %992 = dma.done %s988, 512
        $region80: #{model_forward.10} parent=71 // pred_fallthru
          _
      $region72: #{model_forward.10} parent=5 // pred_fallthru
        _
    $region6: #{model_forward.10} parent=1 // loop_footer
      %s30 = sadd.s32 1, %s26
    $region7: #{model_forward.10} parent=1 // loop_footer_branch
      %25 = sbr.rel target = $region3
    $region8: #{model_forward.10} parent=1 // loop_exit
      _
    %993 = vsyncpa [#allocation3], 1
    %s994 = scalar_lea.sflag [#allocation3], 1
    %995 = vsyncpa %s994, 1
    %996 = vsyncpa [#allocation6], 1
    %s997 = scalar_lea.sflag [#allocation6], 1
    %998 = vsyncpa %s997, 1
    %999 = vsyncpa [#allocation9], 1
    %1000 = vsyncpa [#allocation4], 1
    %s1001 = scalar_lea.sflag [#allocation4], 1
    %1002 = vsyncpa %s1001, 1
    %1003 = vsyncpa [#allocation13], 1
    %s1004 = scalar_lea.sflag [#allocation13], 1
    %1005 = vsyncpa %s1004, 1

</llo_original>
